<compile_context>
chip_gen: v7x
topology: tpu7x:2x2x1
jax: 0.10.0
libtpu: 0.0.40
codegen_flags: <defaults>
</compile_context>

<pallas_src>
import functools

import jax
import jax.numpy as jnp
from jax import lax
from jax.experimental import pallas as pl
from jax.experimental.pallas import tpu as pltpu

LN_EPS = 1e-5        # torch.nn.LayerNorm default eps
NEG_BIG = -1e30      # additive mask for cross-batch logits (exp underflows to 0)


def _normalize(x):
    """LayerNorm without affine (gamma/beta folded into downstream weights)."""
    mu = jnp.mean(x, axis=-1, keepdims=True)
    var = jnp.mean(jnp.square(x - mu), axis=-1, keepdims=True)
    return (x - mu) * lax.rsqrt(var + LN_EPS)


def slot_attention_kernel(iters, eps,
                          x_ref, cond_ref, mask_ref,
                          wkv_ref, bkv_ref, wq_ref, bq_ref,
                          wih_ref, whh_ref, bih_ref, bhh_ref,
                          slots_out_ref, attn_out_ref):
    """Single invocation handles all B batch elements (flattened). n_heads == 1."""
    BN, F = x_ref.shape          # B*N tokens
    BS, D = cond_ref.shape       # B*S slots
    KVQ = wq_ref.shape[1]

    # ---- prologue: input LayerNorm + fused k|v projection (one MXU op) ----
    xn = _normalize(x_ref[...])                                          # (BN, F)
    kv = jnp.dot(xn, wkv_ref[...], preferred_element_type=jnp.float32) + bkv_ref[0]
    k = kv[:, :KVQ]                                                      # (BN, KVQ)
    v = kv[:, KVQ:]                                                      # (BN, KVQ)

    mask = mask_ref[...]                                                 # (BS, BN)
    slots = cond_ref[...]                                                # (BS, D)

    for it in range(iters):  # static unroll (iters is small / fixed)
        slots_prev = slots
        sn = _normalize(slots)
        # ln_s affine + kvq^-0.5 scale are pre-folded into Wq / bq.
        q = jnp.dot(sn, wq_ref[...], preferred_element_type=jnp.float32) + bq_ref[0]

        # logits over ALL batches at once: contract last dims, no K transpose
        # materialized; cross-batch entries masked to a large negative.
        dots = lax.dot_general(q, k, (((1,), (1,)), ((), ())),
                               preferred_element_type=jnp.float32) + mask  # (BS, BN)

        # torch: dots.flatten(1,2).softmax(dim=1)  -> softmax over the SLOT axis,
        # which is the row axis here (cross-batch rows are ~-1e30 -> exp == 0).
        m = jnp.max(dots, axis=0, keepdims=True)
        e = jnp.exp(dots - m)
        inv_den = pl.reciprocal(jnp.sum(e, axis=0, keepdims=True), approx=False)
        attn = e * inv_den                                               # (BS, BN)
        # attn_before_reweighting.mean(dim=2) with 1 head == attn itself.
        # Lane-dense (last dim = BN = multiple of 128) -> unmasked vst.
        attn_out_ref[it] = attn

        # Renorm over tokens (+eps): approx reciprocal (EUP) + one Newton step.
        den = jnp.sum(attn, axis=-1, keepdims=True) + eps
        inv0 = pl.reciprocal(den, approx=True)
        inv_row = inv0 * (2.0 - den * inv0)
        attn_w = attn * inv_row
        # weighted mean of values, all batches in one MXU op (cross-batch attn == 0)
        updates = jnp.dot(attn_w, v, preferred_element_type=jnp.float32)  # (BS, KVQ)

        # ---- GRUCell(updates, slots_prev), torch gate order (r, z, n) ----
        # Two fused (BS,D)@(D,3D) matmuls; gates are static lane slices.
        gi = jnp.dot(updates, wih_ref[...], preferred_element_type=jnp.float32) + bih_ref[0]
        gh = jnp.dot(slots_prev, whh_ref[...], preferred_element_type=jnp.float32) + bhh_ref[0]
        r = jax.nn.sigmoid(gi[:, :D] + gh[:, :D])
        z = jax.nn.sigmoid(gi[:, D:2 * D] + gh[:, D:2 * D])
        n_gate = jnp.tanh(gi[:, 2 * D:] + r * gh[:, 2 * D:])
        slots = (1.0 - z) * n_gate + z * slots_prev
        # ff_mlp is nn.Identity() -> nothing to do.
        # TODO(synk): optional masks / point / dual / lang conditioning branches
        # are not implemented (they default to None in the reference forward).

    slots_out_ref[...] = slots                                            # (BS, D)


def slot_attention_forward(inputs, conditioning, params, *, iters=3, eps=1e-8):
    B, N, F = inputs.shape
    _, S, D = conditioning.shape
    KVQ = params["wq"].shape[1]
    scale = float(KVQ) ** -0.5  # n_heads == 1 -> dims_per_head == KVQ
    BS, BN = B * S, B * N

    # ---- constant parameter transforms (once per call, outside the kernel) ----
    g_in, b_in = params["ln_in_g"][0], params["ln_in_b"][0]       # (F,)
    g_s, b_s = params["ln_s_g"][0], params["ln_s_b"][0]           # (D,)

    # Fold ln_in affine into fused k|v projection:  (xn*g+b) @ W = xn @ (g*W) + b@W
    wkv = jnp.concatenate([g_in[:, None] * params["wk"],
                           g_in[:, None] * params["wv"]], axis=1)          # (F, 2*KVQ)
    bkv = jnp.concatenate([b_in @ params["wk"], b_in @ params["wv"]])[None, :]

    # Fold ln_s affine and the kvq^-0.5 scale into Wq / bq.
    wq_f = (g_s[:, None] * params["wq"]) * scale                           # (D, KVQ)
    bq = (b_s @ params["wq"])[None, :] * scale                             # (1, KVQ)

    # Cross-batch additive mask for the flattened-batch logits matmul.
    row_b = jnp.repeat(jnp.arange(B), S)                                   # (BS,)
    col_b = jnp.repeat(jnp.arange(B), N)                                   # (BN,)
    mask = jnp.where(row_b[:, None] == col_b[None, :], 0.0, NEG_BIG
                     ).astype(jnp.float32)                                 # (BS, BN)

    # Flatten batch in the wrapper (free at the XLA/HBM boundary).
    x_flat = inputs.reshape(BN, F)
    cond_flat = conditioning.reshape(BS, D)

    kernel = functools.partial(slot_attention_kernel, iters, eps)

    # Advisory cost estimate (matmul flops + rough transcendental / byte counts).
    flops = (2 * BN * F * 2 * KVQ
             + iters * (2 * BS * D * KVQ          # q projection
                        + 2 * BS * KVQ * BN       # logits
                        + 2 * BS * BN * KVQ       # updates
                        + 2 * 2 * BS * D * 3 * D))  # GRU gi + gh
    transcendentals = iters * (BS * BN + 3 * BS * D + 2 * BN)
    bytes_accessed = 4 * (BN * F + BS * D + BS * BN
                          + F * 2 * KVQ + 2 * KVQ + D * KVQ + KVQ
                          + 2 * D * 3 * D + 2 * 3 * D
                          + BS * D + iters * BS * BN)

    vmem = pl.BlockSpec(memory_space=pltpu.MemorySpace.VMEM)
    n_inputs = 11

    slots_flat, attn_all = pl.pallas_call(
        kernel,
        out_shape=(jax.ShapeDtypeStruct((BS, D), jnp.float32),
                   jax.ShapeDtypeStruct((iters, BS, BN), jnp.float32)),
        in_specs=[vmem] * n_inputs,
        out_specs=(vmem, vmem),
        cost_estimate=pl.CostEstimate(flops=flops,
                                      transcendentals=transcendentals,
                                      bytes_accessed=bytes_accessed),
    )(x_flat, cond_flat, mask,
      wkv, bkv, wq_f, bq,
      params["wih"], params["whh"], params["bih"], params["bhh"])
    # NOTE: on v7x (2 TCs/chip) a batch grid axis marked "parallel" would use
    # both cores; at this size a single gridless invocation is fastest on
    # v5e/v6e, so we keep it collapsed.

    # Un-flatten in the wrapper: slots back to (B,S,D); attention is the
    # block-diagonal of the flat (BS, BN) matrices.
    slots = slots_flat.reshape(B, S, D)
    attn_b = jnp.stack([attn_all[:, b * S:(b + 1) * S, b * N:(b + 1) * N]
                        for b in range(B)], axis=1)                        # (iters,B,S,N)
    attn_list = [attn_b[i] for i in range(iters)]
    return slots, attn_list[-1], attn_list


def reference(inputs, conditioning, params, iters=3, eps=1e-8):
    """Pure-JAX mirror of the PyTorch forward (for correctness check)."""
    D = conditioning.shape[-1]
    scale = float(params["wq"].shape[1]) ** -0.5

    def ln(x, g, b):
        mu = x.mean(-1, keepdims=True)
        var = ((x - mu) ** 2).mean(-1, keepdims=True)
        return (x - mu) / jnp.sqrt(var + LN_EPS) * g + b

    xn = ln(inputs, params["ln_in_g"][0], params["ln_in_b"][0])
    k = xn @ params["wk"]
    v = xn @ params["wv"]
    slots = conditioning
    attns = []
    for _ in range(iters):
        prev = slots
        sn = ln(slots, params["ln_s_g"][0], params["ln_s_b"][0])
        q = sn @ params["wq"] * scale
        dots = jnp.einsum("bid,bjd->bij", q, k)
        attn = jax.nn.softmax(dots, axis=1)   # softmax over slots
        attns.append(attn)
        aw = attn / (attn.sum(-1, keepdims=True) + eps)
        upd = jnp.einsum("bij,bjd->bid", aw, v)
        gi = upd @ params["wih"] + params["bih"][0]
        gh = prev @ params["whh"] + params["bhh"][0]
        r = jax.nn.sigmoid(gi[..., :D] + gh[..., :D])
        z = jax.nn.sigmoid(gi[..., D:2 * D] + gh[..., D:2 * D])
        n = jnp.tanh(gi[..., 2 * D:] + r * gh[..., 2 * D:])
        slots = (1 - z) * n + z * prev
    return slots, attns[-1], attns


if __name__ == "__main__":
    B, N, F, D, S = 2, 64, 32, 32, 8   # batch, tokens, feature_dim, slot dim, n_slots
    ITERS = 3

    key = jax.random.PRNGKey(0)
    ks = jax.random.split(key, 10)

    inputs = jax.random.normal(ks[0], (B, N, F), jnp.float32)
    conditioning = jax.random.normal(ks[1], (B, S, D), jnp.float32)

    def w(k, shape, fan_in):
        # deterministic uniform(-1/sqrt(fan_in), 1/sqrt(fan_in)) like torch defaults
        return jax.random.uniform(k, shape, jnp.float32, -1.0, 1.0) / jnp.sqrt(fan_in)

    params = dict(
        ln_in_g=jnp.ones((1, F), jnp.float32), ln_in_b=jnp.zeros((1, F), jnp.float32),
        ln_s_g=jnp.ones((1, D), jnp.float32), ln_s_b=jnp.zeros((1, D), jnp.float32),
        wq=w(ks[2], (D, D), D),            # to_q: Linear(qdim=dim -> kvq_dim), no bias
        wk=w(ks[3], (F, D), F),            # to_k
        wv=w(ks[4], (F, D), F),            # to_v
        wih=w(ks[5], (D, 3 * D), D),       # GRU weight_ih^T, gate order (r, z, n)
        whh=w(ks[6], (D, 3 * D), D),       # GRU weight_hh^T
        bih=w(ks[7], (1, 3 * D), D),       # GRU bias_ih
        bhh=w(ks[8], (1, 3 * D), D),       # GRU bias_hh
    )

    out = slot_attention_forward(inputs, conditioning, params, iters=ITERS)
    slots, attn, attn_list = jax.block_until_ready(out)

    slots_ref, attn_ref, attn_list_ref = reference(inputs, conditioning, params, ITERS)
    assert slots.shape == (B, S, D) and attn.shape == (B, S, N) and len(attn_list) == ITERS
    assert jnp.allclose(slots, slots_ref, atol=1e-4, rtol=1e-4)
    assert jnp.allclose(attn, attn_ref, atol=1e-5, rtol=1e-5)
    for a, a_ref in zip(attn_list, attn_list_ref):
        assert jnp.allclose(a, a_ref, atol=1e-5, rtol=1e-5)

    print("KERNEL_OK")
</pallas_src>

<mosaic_0001>
module attributes {stable_mosaic.version = 11 : i64} {
  func.func @slot_attention_kernel(%arg0: memref<128x32xf32, #tpu.memory_space<vmem>>, %arg1: memref<16x32xf32, #tpu.memory_space<vmem>>, %arg2: memref<16x128xf32, #tpu.memory_space<vmem>>, %arg3: memref<32x64xf32, #tpu.memory_space<vmem>>, %arg4: memref<1x64xf32, #tpu.memory_space<vmem>>, %arg5: memref<32x32xf32, #tpu.memory_space<vmem>>, %arg6: memref<1x32xf32, #tpu.memory_space<vmem>>, %arg7: memref<32x96xf32, #tpu.memory_space<vmem>>, %arg8: memref<32x96xf32, #tpu.memory_space<vmem>>, %arg9: memref<1x96xf32, #tpu.memory_space<vmem>>, %arg10: memref<1x96xf32, #tpu.memory_space<vmem>>, %arg11: memref<16x32xf32, #tpu.memory_space<vmem>>, %arg12: memref<3x16x128xf32, #tpu.memory_space<vmem>>) attributes {dimension_semantics = [], scalar_prefetch = 0 : i64, scratch_operands = 0 : i64, tpu.core_type = #tpu.core_type<tc>} {
    %c0 = arith.constant 0 : index
    %c0_0 = arith.constant 0 : index
    %0 = vector.load %arg0[%c0, %c0_0] : memref<128x32xf32, #tpu.memory_space<vmem>>, vector<128x32xf32>
    %cst = arith.constant dense<0.000000e+00> : vector<128xf32>
    %1 = vector.multi_reduction <add>, %0, %cst [1] : vector<128x32xf32> to vector<128xf32>
    %2 = vector.shape_cast %1 : vector<128xf32> to vector<128x1xf32>
    %cst_1 = arith.constant 3.200000e+01 : f32
    %3 = vector.broadcast %cst_1 : f32 to vector<128x1xf32>
    %4 = arith.divf %2, %3 : vector<128x1xf32>
    %5 = vector.broadcast %4 : vector<128x1xf32> to vector<128x32xf32>
    %6 = arith.subf %0, %5 : vector<128x32xf32>
    %7 = arith.mulf %6, %6 : vector<128x32xf32>
    %cst_2 = arith.constant dense<0.000000e+00> : vector<128xf32>
    %8 = vector.multi_reduction <add>, %7, %cst_2 [1] : vector<128x32xf32> to vector<128xf32>
    %9 = vector.shape_cast %8 : vector<128xf32> to vector<128x1xf32>
    %cst_3 = arith.constant 3.200000e+01 : f32
    %10 = vector.broadcast %cst_3 : f32 to vector<128x1xf32>
    %11 = arith.divf %9, %10 : vector<128x1xf32>
    %12 = vector.broadcast %4 : vector<128x1xf32> to vector<128x32xf32>
    %13 = arith.subf %0, %12 : vector<128x32xf32>
    %cst_4 = arith.constant 9.99999974E-6 : f32
    %14 = vector.broadcast %cst_4 : f32 to vector<128x1xf32>
    %15 = arith.addf %11, %14 : vector<128x1xf32>
    %16 = math.rsqrt %15 : vector<128x1xf32>
    %17 = vector.broadcast %16 : vector<128x1xf32> to vector<128x32xf32>
    %18 = arith.mulf %13, %17 : vector<128x32xf32>
    %c0_5 = arith.constant 0 : index
    %c0_6 = arith.constant 0 : index
    %19 = vector.load %arg3[%c0_5, %c0_6] : memref<32x64xf32, #tpu.memory_space<vmem>>, vector<32x64xf32>
    %cst_7 = arith.constant dense<0.000000e+00> : vector<128x64xf32>
    %20 = tpu.matmul %18, %19, %cst_7 {dimension_numbers = #tpu.dot_dimension_numbers<[1], [0], [0], [1], [0, 0, 1, 1], [], []>} : vector<128x32xf32>, vector<32x64xf32>, vector<128x64xf32> -> vector<128x64xf32>
    %c0_8 = arith.constant 0 : index
    %c0_9 = arith.constant 0 : index
    %21 = vector.load %arg4[%c0_8, %c0_9] : memref<1x64xf32, #tpu.memory_space<vmem>>, vector<1x64xf32>
    %22 = vector.shape_cast %21 : vector<1x64xf32> to vector<64xf32>
    %23 = vector.shape_cast %22 : vector<64xf32> to vector<1x64xf32>
    %24 = vector.broadcast %23 : vector<1x64xf32> to vector<128x64xf32>
    %25 = arith.addf %20, %24 : vector<128x64xf32>
    %26 = vector.extract_strided_slice %25 {offsets = [0, 0], sizes = [128, 32], strides = [1, 1]} : vector<128x64xf32> to vector<128x32xf32>
    %27 = vector.extract_strided_slice %25 {offsets = [0, 32], sizes = [128, 32], strides = [1, 1]} : vector<128x64xf32> to vector<128x32xf32>
    %c0_10 = arith.constant 0 : index
    %c0_11 = arith.constant 0 : index
    %28 = vector.load %arg2[%c0_10, %c0_11] : memref<16x128xf32, #tpu.memory_space<vmem>>, vector<16x128xf32>
    %c0_12 = arith.constant 0 : index
    %c0_13 = arith.constant 0 : index
    %29 = vector.load %arg1[%c0_12, %c0_13] : memref<16x32xf32, #tpu.memory_space<vmem>>, vector<16x32xf32>
    %cst_14 = arith.constant dense<0.000000e+00> : vector<16xf32>
    %30 = vector.multi_reduction <add>, %29, %cst_14 [1] : vector<16x32xf32> to vector<16xf32>
    %31 = vector.shape_cast %30 : vector<16xf32> to vector<16x1xf32>
    %cst_15 = arith.constant 3.200000e+01 : f32
    %32 = vector.broadcast %cst_15 : f32 to vector<16x1xf32>
    %33 = arith.divf %31, %32 : vector<16x1xf32>
    %34 = vector.broadcast %33 : vector<16x1xf32> to vector<16x32xf32>
    %35 = arith.subf %29, %34 : vector<16x32xf32>
    %36 = arith.mulf %35, %35 : vector<16x32xf32>
    %cst_16 = arith.constant dense<0.000000e+00> : vector<16xf32>
    %37 = vector.multi_reduction <add>, %36, %cst_16 [1] : vector<16x32xf32> to vector<16xf32>
    %38 = vector.shape_cast %37 : vector<16xf32> to vector<16x1xf32>
    %cst_17 = arith.constant 3.200000e+01 : f32
    %39 = vector.broadcast %cst_17 : f32 to vector<16x1xf32>
    %40 = arith.divf %38, %39 : vector<16x1xf32>
    %41 = vector.broadcast %33 : vector<16x1xf32> to vector<16x32xf32>
    %42 = arith.subf %29, %41 : vector<16x32xf32>
    %cst_18 = arith.constant 9.99999974E-6 : f32
    %43 = vector.broadcast %cst_18 : f32 to vector<16x1xf32>
    %44 = arith.addf %40, %43 : vector<16x1xf32>
    %45 = math.rsqrt %44 : vector<16x1xf32>
    %46 = vector.broadcast %45 : vector<16x1xf32> to vector<16x32xf32>
    %47 = arith.mulf %42, %46 : vector<16x32xf32>
    %c0_19 = arith.constant 0 : index
    %c0_20 = arith.constant 0 : index
    %48 = vector.load %arg5[%c0_19, %c0_20] : memref<32x32xf32, #tpu.memory_space<vmem>>, vector<32x32xf32>
    %cst_21 = arith.constant dense<0.000000e+00> : vector<16x32xf32>
    %49 = tpu.matmul %47, %48, %cst_21 {dimension_numbers = #tpu.dot_dimension_numbers<[1], [0], [0], [1], [0, 0, 1, 1], [], []>} : vector<16x32xf32>, vector<32x32xf32>, vector<16x32xf32> -> vector<16x32xf32>
    %c0_22 = arith.constant 0 : index
    %c0_23 = arith.constant 0 : index
    %50 = vector.load %arg6[%c0_22, %c0_23] : memref<1x32xf32, #tpu.memory_space<vmem>>, vector<1x32xf32>
    %51 = vector.shape_cast %50 : vector<1x32xf32> to vector<32xf32>
    %52 = vector.shape_cast %51 : vector<32xf32> to vector<1x32xf32>
    %53 = vector.broadcast %52 : vector<1x32xf32> to vector<16x32xf32>
    %54 = arith.addf %49, %53 : vector<16x32xf32>
    %cst_24 = arith.constant dense<0.000000e+00> : vector<16x128xf32>
    %55 = tpu.matmul %54, %26, %cst_24 {dimension_numbers = #tpu.dot_dimension_numbers<[1], [1], [0], [0], [0, 0, 1, 0], [], []>} : vector<16x32xf32>, vector<128x32xf32>, vector<16x128xf32> -> vector<16x128xf32>
    %56 = arith.addf %55, %28 : vector<16x128xf32>
    %cst_25 = arith.constant dense<0xFF800000> : vector<128xf32>
    %57 = vector.multi_reduction <maximumf>, %56, %cst_25 [0] : vector<16x128xf32> to vector<128xf32>
    %58 = vector.shape_cast %57 : vector<128xf32> to vector<1x128xf32>
    %59 = vector.broadcast %58 : vector<1x128xf32> to vector<16x128xf32>
    %60 = arith.subf %56, %59 : vector<16x128xf32>
    %61 = math.exp %60 : vector<16x128xf32>
    %cst_26 = arith.constant dense<0.000000e+00> : vector<128xf32>
    %62 = vector.multi_reduction <add>, %61, %cst_26 [0] : vector<16x128xf32> to vector<128xf32>
    %63 = vector.shape_cast %62 : vector<128xf32> to vector<1x128xf32>
    %64 = tpu.reciprocal %63 : vector<1x128xf32> -> vector<1x128xf32>
    %65 = vector.broadcast %64 : vector<1x128xf32> to vector<16x128xf32>
    %66 = arith.mulf %61, %65 : vector<16x128xf32>
    %c0_27 = arith.constant 0 : index
    %c0_28 = arith.constant 0 : index
    %c0_29 = arith.constant 0 : index
    %67 = vector.load %arg12[%c0_27, %c0_28, %c0_29] : memref<3x16x128xf32, #tpu.memory_space<vmem>>, vector<1x16x128xf32>
    %68 = vector.shape_cast %67 : vector<1x16x128xf32> to vector<16x128xf32>
    %69 = vector.shape_cast %66 : vector<16x128xf32> to vector<1x16x128xf32>
    tpu.vector_store %arg12[%c0_27, %c0_28, %c0_29], %69 {strides = array<i32>} : memref<3x16x128xf32, #tpu.memory_space<vmem>>, vector<1x16x128xf32>,
    %cst_30 = arith.constant dense<0.000000e+00> : vector<16xf32>
    %70 = vector.multi_reduction <add>, %66, %cst_30 [1] : vector<16x128xf32> to vector<16xf32>
    %71 = vector.shape_cast %70 : vector<16xf32> to vector<16x1xf32>
    %cst_31 = arith.constant 9.99999993E-9 : f32
    %72 = vector.broadcast %cst_31 : f32 to vector<16x1xf32>
    %73 = arith.addf %71, %72 : vector<16x1xf32>
    %74 = tpu.reciprocal %73 {approx = true} : vector<16x1xf32> -> vector<16x1xf32>
    %75 = arith.mulf %73, %74 : vector<16x1xf32>
    %cst_32 = arith.constant 2.000000e+00 : f32
    %76 = vector.broadcast %cst_32 : f32 to vector<16x1xf32>
    %77 = arith.subf %76, %75 : vector<16x1xf32>
    %78 = arith.mulf %74, %77 : vector<16x1xf32>
    %79 = vector.broadcast %78 : vector<16x1xf32> to vector<16x128xf32>
    %80 = arith.mulf %66, %79 : vector<16x128xf32>
    %cst_33 = arith.constant dense<0.000000e+00> : vector<16x32xf32>
    %81 = tpu.matmul %80, %27, %cst_33 {dimension_numbers = #tpu.dot_dimension_numbers<[1], [0], [0], [1], [0, 0, 1, 1], [], []>} : vector<16x128xf32>, vector<128x32xf32>, vector<16x32xf32> -> vector<16x32xf32>
    %c0_34 = arith.constant 0 : index
    %c0_35 = arith.constant 0 : index
    %82 = vector.load %arg7[%c0_34, %c0_35] : memref<32x96xf32, #tpu.memory_space<vmem>>, vector<32x96xf32>
    %cst_36 = arith.constant dense<0.000000e+00> : vector<16x96xf32>
    %83 = tpu.matmul %81, %82, %cst_36 {dimension_numbers = #tpu.dot_dimension_numbers<[1], [0], [0], [1], [0, 0, 1, 1], [], []>} : vector<16x32xf32>, vector<32x96xf32>, vector<16x96xf32> -> vector<16x96xf32>
    %c0_37 = arith.constant 0 : index
    %c0_38 = arith.constant 0 : index
    %84 = vector.load %arg9[%c0_37, %c0_38] : memref<1x96xf32, #tpu.memory_space<vmem>>, vector<1x96xf32>
    %85 = vector.shape_cast %84 : vector<1x96xf32> to vector<96xf32>
    %86 = vector.shape_cast %85 : vector<96xf32> to vector<1x96xf32>
    %87 = vector.broadcast %86 : vector<1x96xf32> to vector<16x96xf32>
    %88 = arith.addf %83, %87 : vector<16x96xf32>
    %c0_39 = arith.constant 0 : index
    %c0_40 = arith.constant 0 : index
    %89 = vector.load %arg8[%c0_39, %c0_40] : memref<32x96xf32, #tpu.memory_space<vmem>>, vector<32x96xf32>
    %cst_41 = arith.constant dense<0.000000e+00> : vector<16x96xf32>
    %90 = tpu.matmul %29, %89, %cst_41 {dimension_numbers = #tpu.dot_dimension_numbers<[1], [0], [0], [1], [0, 0, 1, 1], [], []>} : vector<16x32xf32>, vector<32x96xf32>, vector<16x96xf32> -> vector<16x96xf32>
    %c0_42 = arith.constant 0 : index
    %c0_43 = arith.constant 0 : index
    %91 = vector.load %arg10[%c0_42, %c0_43] : memref<1x96xf32, #tpu.memory_space<vmem>>, vector<1x96xf32>
    %92 = vector.shape_cast %91 : vector<1x96xf32> to vector<96xf32>
    %93 = vector.shape_cast %92 : vector<96xf32> to vector<1x96xf32>
    %94 = vector.broadcast %93 : vector<1x96xf32> to vector<16x96xf32>
    %95 = arith.addf %90, %94 : vector<16x96xf32>
    %96 = vector.extract_strided_slice %88 {offsets = [0, 0], sizes = [16, 32], strides = [1, 1]} : vector<16x96xf32> to vector<16x32xf32>
    %97 = vector.extract_strided_slice %95 {offsets = [0, 0], sizes = [16, 32], strides = [1, 1]} : vector<16x96xf32> to vector<16x32xf32>
    %98 = arith.addf %96, %97 : vector<16x32xf32>
    %99 = arith.negf %98 : vector<16x32xf32>
    %100 = math.exp %99 : vector<16x32xf32>
    %cst_44 = arith.constant 1.000000e+00 : f32
    %101 = vector.broadcast %cst_44 : f32 to vector<16x32xf32>
    %102 = arith.addf %101, %100 : vector<16x32xf32>
    %103 = arith.divf %101, %102 : vector<16x32xf32>
    %104 = vector.extract_strided_slice %88 {offsets = [0, 32], sizes = [16, 32], strides = [1, 1]} : vector<16x96xf32> to vector<16x32xf32>
    %105 = vector.extract_strided_slice %95 {offsets = [0, 32], sizes = [16, 32], strides = [1, 1]} : vector<16x96xf32> to vector<16x32xf32>
    %106 = arith.addf %104, %105 : vector<16x32xf32>
    %107 = arith.negf %106 : vector<16x32xf32>
    %108 = math.exp %107 : vector<16x32xf32>
    %cst_45 = arith.constant 1.000000e+00 : f32
    %109 = vector.broadcast %cst_45 : f32 to vector<16x32xf32>
    %110 = arith.addf %109, %108 : vector<16x32xf32>
    %111 = arith.divf %109, %110 : vector<16x32xf32>
    %112 = vector.extract_strided_slice %88 {offsets = [0, 64], sizes = [16, 32], strides = [1, 1]} : vector<16x96xf32> to vector<16x32xf32>
    %113 = vector.extract_strided_slice %95 {offsets = [0, 64], sizes = [16, 32], strides = [1, 1]} : vector<16x96xf32> to vector<16x32xf32>
    %114 = arith.mulf %103, %113 : vector<16x32xf32>
    %115 = arith.addf %112, %114 : vector<16x32xf32>
    %116 = math.tanh %115 : vector<16x32xf32>
    %cst_46 = arith.constant 1.000000e+00 : f32
    %117 = vector.broadcast %cst_46 : f32 to vector<16x32xf32>
    %118 = arith.subf %117, %111 : vector<16x32xf32>
    %119 = arith.mulf %118, %116 : vector<16x32xf32>
    %120 = arith.mulf %111, %29 : vector<16x32xf32>
    %121 = arith.addf %119, %120 : vector<16x32xf32>
    %cst_47 = arith.constant dense<0.000000e+00> : vector<16xf32>
    %122 = vector.multi_reduction <add>, %121, %cst_47 [1] : vector<16x32xf32> to vector<16xf32>
    %123 = vector.shape_cast %122 : vector<16xf32> to vector<16x1xf32>
    %cst_48 = arith.constant 3.200000e+01 : f32
    %124 = vector.broadcast %cst_48 : f32 to vector<16x1xf32>
    %125 = arith.divf %123, %124 : vector<16x1xf32>
    %126 = vector.broadcast %125 : vector<16x1xf32> to vector<16x32xf32>
    %127 = arith.subf %121, %126 : vector<16x32xf32>
    %128 = arith.mulf %127, %127 : vector<16x32xf32>
    %cst_49 = arith.constant dense<0.000000e+00> : vector<16xf32>
    %129 = vector.multi_reduction <add>, %128, %cst_49 [1] : vector<16x32xf32> to vector<16xf32>
    %130 = vector.shape_cast %129 : vector<16xf32> to vector<16x1xf32>
    %cst_50 = arith.constant 3.200000e+01 : f32
    %131 = vector.broadcast %cst_50 : f32 to vector<16x1xf32>
    %132 = arith.divf %130, %131 : vector<16x1xf32>
    %133 = vector.broadcast %125 : vector<16x1xf32> to vector<16x32xf32>
    %134 = arith.subf %121, %133 : vector<16x32xf32>
    %cst_51 = arith.constant 9.99999974E-6 : f32
    %135 = vector.broadcast %cst_51 : f32 to vector<16x1xf32>
    %136 = arith.addf %132, %135 : vector<16x1xf32>
    %137 = math.rsqrt %136 : vector<16x1xf32>
    %138 = vector.broadcast %137 : vector<16x1xf32> to vector<16x32xf32>
    %139 = arith.mulf %134, %138 : vector<16x32xf32>
    %c0_52 = arith.constant 0 : index
    %c0_53 = arith.constant 0 : index
    %140 = vector.load %arg5[%c0_52, %c0_53] : memref<32x32xf32, #tpu.memory_space<vmem>>, vector<32x32xf32>
    %cst_54 = arith.constant dense<0.000000e+00> : vector<16x32xf32>
    %141 = tpu.matmul %139, %140, %cst_54 {dimension_numbers = #tpu.dot_dimension_numbers<[1], [0], [0], [1], [0, 0, 1, 1], [], []>} : vector<16x32xf32>, vector<32x32xf32>, vector<16x32xf32> -> vector<16x32xf32>
    %c0_55 = arith.constant 0 : index
    %c0_56 = arith.constant 0 : index
    %142 = vector.load %arg6[%c0_55, %c0_56] : memref<1x32xf32, #tpu.memory_space<vmem>>, vector<1x32xf32>
    %143 = vector.shape_cast %142 : vector<1x32xf32> to vector<32xf32>
    %144 = vector.shape_cast %143 : vector<32xf32> to vector<1x32xf32>
    %145 = vector.broadcast %144 : vector<1x32xf32> to vector<16x32xf32>
    %146 = arith.addf %141, %145 : vector<16x32xf32>
    %cst_57 = arith.constant dense<0.000000e+00> : vector<16x128xf32>
    %147 = tpu.matmul %146, %26, %cst_57 {dimension_numbers = #tpu.dot_dimension_numbers<[1], [1], [0], [0], [0, 0, 1, 0], [], []>} : vector<16x32xf32>, vector<128x32xf32>, vector<16x128xf32> -> vector<16x128xf32>
    %148 = arith.addf %147, %28 : vector<16x128xf32>
    %cst_58 = arith.constant dense<0xFF800000> : vector<128xf32>
    %149 = vector.multi_reduction <maximumf>, %148, %cst_58 [0] : vector<16x128xf32> to vector<128xf32>
    %150 = vector.shape_cast %149 : vector<128xf32> to vector<1x128xf32>
    %151 = vector.broadcast %150 : vector<1x128xf32> to vector<16x128xf32>
    %152 = arith.subf %148, %151 : vector<16x128xf32>
    %153 = math.exp %152 : vector<16x128xf32>
    %cst_59 = arith.constant dense<0.000000e+00> : vector<128xf32>
    %154 = vector.multi_reduction <add>, %153, %cst_59 [0] : vector<16x128xf32> to vector<128xf32>
    %155 = vector.shape_cast %154 : vector<128xf32> to vector<1x128xf32>
    %156 = tpu.reciprocal %155 : vector<1x128xf32> -> vector<1x128xf32>
    %157 = vector.broadcast %156 : vector<1x128xf32> to vector<16x128xf32>
    %158 = arith.mulf %153, %157 : vector<16x128xf32>
    %c1 = arith.constant 1 : index
    %c0_60 = arith.constant 0 : index
    %c0_61 = arith.constant 0 : index
    %159 = vector.load %arg12[%c1, %c0_60, %c0_61] : memref<3x16x128xf32, #tpu.memory_space<vmem>>, vector<1x16x128xf32>
    %160 = vector.shape_cast %159 : vector<1x16x128xf32> to vector<16x128xf32>
    %161 = vector.shape_cast %158 : vector<16x128xf32> to vector<1x16x128xf32>
    tpu.vector_store %arg12[%c1, %c0_60, %c0_61], %161 {strides = array<i32>} : memref<3x16x128xf32, #tpu.memory_space<vmem>>, vector<1x16x128xf32>,
    %cst_62 = arith.constant dense<0.000000e+00> : vector<16xf32>
    %162 = vector.multi_reduction <add>, %158, %cst_62 [1] : vector<16x128xf32> to vector<16xf32>
    %163 = vector.shape_cast %162 : vector<16xf32> to vector<16x1xf32>
    %cst_63 = arith.constant 9.99999993E-9 : f32
    %164 = vector.broadcast %cst_63 : f32 to vector<16x1xf32>
    %165 = arith.addf %163, %164 : vector<16x1xf32>
    %166 = tpu.reciprocal %165 {approx = true} : vector<16x1xf32> -> vector<16x1xf32>
    %167 = arith.mulf %165, %166 : vector<16x1xf32>
    %cst_64 = arith.constant 2.000000e+00 : f32
    %168 = vector.broadcast %cst_64 : f32 to vector<16x1xf32>
    %169 = arith.subf %168, %167 : vector<16x1xf32>
    %170 = arith.mulf %166, %169 : vector<16x1xf32>
    %171 = vector.broadcast %170 : vector<16x1xf32> to vector<16x128xf32>
    %172 = arith.mulf %158, %171 : vector<16x128xf32>
    %cst_65 = arith.constant dense<0.000000e+00> : vector<16x32xf32>
    %173 = tpu.matmul %172, %27, %cst_65 {dimension_numbers = #tpu.dot_dimension_numbers<[1], [0], [0], [1], [0, 0, 1, 1], [], []>} : vector<16x128xf32>, vector<128x32xf32>, vector<16x32xf32> -> vector<16x32xf32>
    %c0_66 = arith.constant 0 : index
    %c0_67 = arith.constant 0 : index
    %174 = vector.load %arg7[%c0_66, %c0_67] : memref<32x96xf32, #tpu.memory_space<vmem>>, vector<32x96xf32>
    %cst_68 = arith.constant dense<0.000000e+00> : vector<16x96xf32>
    %175 = tpu.matmul %173, %174, %cst_68 {dimension_numbers = #tpu.dot_dimension_numbers<[1], [0], [0], [1], [0, 0, 1, 1], [], []>} : vector<16x32xf32>, vector<32x96xf32>, vector<16x96xf32> -> vector<16x96xf32>
    %c0_69 = arith.constant 0 : index
    %c0_70 = arith.constant 0 : index
    %176 = vector.load %arg9[%c0_69, %c0_70] : memref<1x96xf32, #tpu.memory_space<vmem>>, vector<1x96xf32>
    %177 = vector.shape_cast %176 : vector<1x96xf32> to vector<96xf32>
    %178 = vector.shape_cast %177 : vector<96xf32> to vector<1x96xf32>
    %179 = vector.broadcast %178 : vector<1x96xf32> to vector<16x96xf32>
    %180 = arith.addf %175, %179 : vector<16x96xf32>
    %c0_71 = arith.constant 0 : index
    %c0_72 = arith.constant 0 : index
    %181 = vector.load %arg8[%c0_71, %c0_72] : memref<32x96xf32, #tpu.memory_space<vmem>>, vector<32x96xf32>
    %cst_73 = arith.constant dense<0.000000e+00> : vector<16x96xf32>
    %182 = tpu.matmul %121, %181, %cst_73 {dimension_numbers = #tpu.dot_dimension_numbers<[1], [0], [0], [1], [0, 0, 1, 1], [], []>} : vector<16x32xf32>, vector<32x96xf32>, vector<16x96xf32> -> vector<16x96xf32>
    %c0_74 = arith.constant 0 : index
    %c0_75 = arith.constant 0 : index
    %183 = vector.load %arg10[%c0_74, %c0_75] : memref<1x96xf32, #tpu.memory_space<vmem>>, vector<1x96xf32>
    %184 = vector.shape_cast %183 : vector<1x96xf32> to vector<96xf32>
    %185 = vector.shape_cast %184 : vector<96xf32> to vector<1x96xf32>
    %186 = vector.broadcast %185 : vector<1x96xf32> to vector<16x96xf32>
    %187 = arith.addf %182, %186 : vector<16x96xf32>
    %188 = vector.extract_strided_slice %180 {offsets = [0, 0], sizes = [16, 32], strides = [1, 1]} : vector<16x96xf32> to vector<16x32xf32>
    %189 = vector.extract_strided_slice %187 {offsets = [0, 0], sizes = [16, 32], strides = [1, 1]} : vector<16x96xf32> to vector<16x32xf32>
    %190 = arith.addf %188, %189 : vector<16x32xf32>
    %191 = arith.negf %190 : vector<16x32xf32>
    %192 = math.exp %191 : vector<16x32xf32>
    %cst_76 = arith.constant 1.000000e+00 : f32
    %193 = vector.broadcast %cst_76 : f32 to vector<16x32xf32>
    %194 = arith.addf %193, %192 : vector<16x32xf32>
    %195 = arith.divf %193, %194 : vector<16x32xf32>
    %196 = vector.extract_strided_slice %180 {offsets = [0, 32], sizes = [16, 32], strides = [1, 1]} : vector<16x96xf32> to vector<16x32xf32>
    %197 = vector.extract_strided_slice %187 {offsets = [0, 32], sizes = [16, 32], strides = [1, 1]} : vector<16x96xf32> to vector<16x32xf32>
    %198 = arith.addf %196, %197 : vector<16x32xf32>
    %199 = arith.negf %198 : vector<16x32xf32>
    %200 = math.exp %199 : vector<16x32xf32>
    %cst_77 = arith.constant 1.000000e+00 : f32
    %201 = vector.broadcast %cst_77 : f32 to vector<16x32xf32>
    %202 = arith.addf %201, %200 : vector<16x32xf32>
    %203 = arith.divf %201, %202 : vector<16x32xf32>
    %204 = vector.extract_strided_slice %180 {offsets = [0, 64], sizes = [16, 32], strides = [1, 1]} : vector<16x96xf32> to vector<16x32xf32>
    %205 = vector.extract_strided_slice %187 {offsets = [0, 64], sizes = [16, 32], strides = [1, 1]} : vector<16x96xf32> to vector<16x32xf32>
    %206 = arith.mulf %195, %205 : vector<16x32xf32>
    %207 = arith.addf %204, %206 : vector<16x32xf32>
    %208 = math.tanh %207 : vector<16x32xf32>
    %cst_78 = arith.constant 1.000000e+00 : f32
    %209 = vector.broadcast %cst_78 : f32 to vector<16x32xf32>
    %210 = arith.subf %209, %203 : vector<16x32xf32>
    %211 = arith.mulf %210, %208 : vector<16x32xf32>
    %212 = arith.mulf %203, %121 : vector<16x32xf32>
    %213 = arith.addf %211, %212 : vector<16x32xf32>
    %cst_79 = arith.constant dense<0.000000e+00> : vector<16xf32>
    %214 = vector.multi_reduction <add>, %213, %cst_79 [1] : vector<16x32xf32> to vector<16xf32>
    %215 = vector.shape_cast %214 : vector<16xf32> to vector<16x1xf32>
    %cst_80 = arith.constant 3.200000e+01 : f32
    %216 = vector.broadcast %cst_80 : f32 to vector<16x1xf32>
    %217 = arith.divf %215, %216 : vector<16x1xf32>
    %218 = vector.broadcast %217 : vector<16x1xf32> to vector<16x32xf32>
    %219 = arith.subf %213, %218 : vector<16x32xf32>
    %220 = arith.mulf %219, %219 : vector<16x32xf32>
    %cst_81 = arith.constant dense<0.000000e+00> : vector<16xf32>
    %221 = vector.multi_reduction <add>, %220, %cst_81 [1] : vector<16x32xf32> to vector<16xf32>
    %222 = vector.shape_cast %221 : vector<16xf32> to vector<16x1xf32>
    %cst_82 = arith.constant 3.200000e+01 : f32
    %223 = vector.broadcast %cst_82 : f32 to vector<16x1xf32>
    %224 = arith.divf %222, %223 : vector<16x1xf32>
    %225 = vector.broadcast %217 : vector<16x1xf32> to vector<16x32xf32>
    %226 = arith.subf %213, %225 : vector<16x32xf32>
    %cst_83 = arith.constant 9.99999974E-6 : f32
    %227 = vector.broadcast %cst_83 : f32 to vector<16x1xf32>
    %228 = arith.addf %224, %227 : vector<16x1xf32>
    %229 = math.rsqrt %228 : vector<16x1xf32>
    %230 = vector.broadcast %229 : vector<16x1xf32> to vector<16x32xf32>
    %231 = arith.mulf %226, %230 : vector<16x32xf32>
    %c0_84 = arith.constant 0 : index
    %c0_85 = arith.constant 0 : index
    %232 = vector.load %arg5[%c0_84, %c0_85] : memref<32x32xf32, #tpu.memory_space<vmem>>, vector<32x32xf32>
    %cst_86 = arith.constant dense<0.000000e+00> : vector<16x32xf32>
    %233 = tpu.matmul %231, %232, %cst_86 {dimension_numbers = #tpu.dot_dimension_numbers<[1], [0], [0], [1], [0, 0, 1, 1], [], []>} : vector<16x32xf32>, vector<32x32xf32>, vector<16x32xf32> -> vector<16x32xf32>
    %c0_87 = arith.constant 0 : index
    %c0_88 = arith.constant 0 : index
    %234 = vector.load %arg6[%c0_87, %c0_88] : memref<1x32xf32, #tpu.memory_space<vmem>>, vector<1x32xf32>
    %235 = vector.shape_cast %234 : vector<1x32xf32> to vector<32xf32>
    %236 = vector.shape_cast %235 : vector<32xf32> to vector<1x32xf32>
    %237 = vector.broadcast %236 : vector<1x32xf32> to vector<16x32xf32>
    %238 = arith.addf %233, %237 : vector<16x32xf32>
    %cst_89 = arith.constant dense<0.000000e+00> : vector<16x128xf32>
    %239 = tpu.matmul %238, %26, %cst_89 {dimension_numbers = #tpu.dot_dimension_numbers<[1], [1], [0], [0], [0, 0, 1, 0], [], []>} : vector<16x32xf32>, vector<128x32xf32>, vector<16x128xf32> -> vector<16x128xf32>
    %240 = arith.addf %239, %28 : vector<16x128xf32>
    %cst_90 = arith.constant dense<0xFF800000> : vector<128xf32>
    %241 = vector.multi_reduction <maximumf>, %240, %cst_90 [0] : vector<16x128xf32> to vector<128xf32>
    %242 = vector.shape_cast %241 : vector<128xf32> to vector<1x128xf32>
    %243 = vector.broadcast %242 : vector<1x128xf32> to vector<16x128xf32>
    %244 = arith.subf %240, %243 : vector<16x128xf32>
    %245 = math.exp %244 : vector<16x128xf32>
    %cst_91 = arith.constant dense<0.000000e+00> : vector<128xf32>
    %246 = vector.multi_reduction <add>, %245, %cst_91 [0] : vector<16x128xf32> to vector<128xf32>
    %247 = vector.shape_cast %246 : vector<128xf32> to vector<1x128xf32>
    %248 = tpu.reciprocal %247 : vector<1x128xf32> -> vector<1x128xf32>
    %249 = vector.broadcast %248 : vector<1x128xf32> to vector<16x128xf32>
    %250 = arith.mulf %245, %249 : vector<16x128xf32>
    %c2 = arith.constant 2 : index
    %c0_92 = arith.constant 0 : index
    %c0_93 = arith.constant 0 : index
    %251 = vector.load %arg12[%c2, %c0_92, %c0_93] : memref<3x16x128xf32, #tpu.memory_space<vmem>>, vector<1x16x128xf32>
    %252 = vector.shape_cast %251 : vector<1x16x128xf32> to vector<16x128xf32>
    %253 = vector.shape_cast %250 : vector<16x128xf32> to vector<1x16x128xf32>
    tpu.vector_store %arg12[%c2, %c0_92, %c0_93], %253 {strides = array<i32>} : memref<3x16x128xf32, #tpu.memory_space<vmem>>, vector<1x16x128xf32>,
    %cst_94 = arith.constant dense<0.000000e+00> : vector<16xf32>
    %254 = vector.multi_reduction <add>, %250, %cst_94 [1] : vector<16x128xf32> to vector<16xf32>
    %255 = vector.shape_cast %254 : vector<16xf32> to vector<16x1xf32>
    %cst_95 = arith.constant 9.99999993E-9 : f32
    %256 = vector.broadcast %cst_95 : f32 to vector<16x1xf32>
    %257 = arith.addf %255, %256 : vector<16x1xf32>
    %258 = tpu.reciprocal %257 {approx = true} : vector<16x1xf32> -> vector<16x1xf32>
    %259 = arith.mulf %257, %258 : vector<16x1xf32>
    %cst_96 = arith.constant 2.000000e+00 : f32
    %260 = vector.broadcast %cst_96 : f32 to vector<16x1xf32>
    %261 = arith.subf %260, %259 : vector<16x1xf32>
    %262 = arith.mulf %258, %261 : vector<16x1xf32>
    %263 = vector.broadcast %262 : vector<16x1xf32> to vector<16x128xf32>
    %264 = arith.mulf %250, %263 : vector<16x128xf32>
    %cst_97 = arith.constant dense<0.000000e+00> : vector<16x32xf32>
    %265 = tpu.matmul %264, %27, %cst_97 {dimension_numbers = #tpu.dot_dimension_numbers<[1], [0], [0], [1], [0, 0, 1, 1], [], []>} : vector<16x128xf32>, vector<128x32xf32>, vector<16x32xf32> -> vector<16x32xf32>
    %c0_98 = arith.constant 0 : index
    %c0_99 = arith.constant 0 : index
    %266 = vector.load %arg7[%c0_98, %c0_99] : memref<32x96xf32, #tpu.memory_space<vmem>>, vector<32x96xf32>
    %cst_100 = arith.constant dense<0.000000e+00> : vector<16x96xf32>
    %267 = tpu.matmul %265, %266, %cst_100 {dimension_numbers = #tpu.dot_dimension_numbers<[1], [0], [0], [1], [0, 0, 1, 1], [], []>} : vector<16x32xf32>, vector<32x96xf32>, vector<16x96xf32> -> vector<16x96xf32>
    %c0_101 = arith.constant 0 : index
    %c0_102 = arith.constant 0 : index
    %268 = vector.load %arg9[%c0_101, %c0_102] : memref<1x96xf32, #tpu.memory_space<vmem>>, vector<1x96xf32>
    %269 = vector.shape_cast %268 : vector<1x96xf32> to vector<96xf32>
    %270 = vector.shape_cast %269 : vector<96xf32> to vector<1x96xf32>
    %271 = vector.broadcast %270 : vector<1x96xf32> to vector<16x96xf32>
    %272 = arith.addf %267, %271 : vector<16x96xf32>
    %c0_103 = arith.constant 0 : index
    %c0_104 = arith.constant 0 : index
    %273 = vector.load %arg8[%c0_103, %c0_104] : memref<32x96xf32, #tpu.memory_space<vmem>>, vector<32x96xf32>
    %cst_105 = arith.constant dense<0.000000e+00> : vector<16x96xf32>
    %274 = tpu.matmul %213, %273, %cst_105 {dimension_numbers = #tpu.dot_dimension_numbers<[1], [0], [0], [1], [0, 0, 1, 1], [], []>} : vector<16x32xf32>, vector<32x96xf32>, vector<16x96xf32> -> vector<16x96xf32>
    %c0_106 = arith.constant 0 : index
    %c0_107 = arith.constant 0 : index
    %275 = vector.load %arg10[%c0_106, %c0_107] : memref<1x96xf32, #tpu.memory_space<vmem>>, vector<1x96xf32>
    %276 = vector.shape_cast %275 : vector<1x96xf32> to vector<96xf32>
    %277 = vector.shape_cast %276 : vector<96xf32> to vector<1x96xf32>
    %278 = vector.broadcast %277 : vector<1x96xf32> to vector<16x96xf32>
    %279 = arith.addf %274, %278 : vector<16x96xf32>
    %280 = vector.extract_strided_slice %272 {offsets = [0, 0], sizes = [16, 32], strides = [1, 1]} : vector<16x96xf32> to vector<16x32xf32>
    %281 = vector.extract_strided_slice %279 {offsets = [0, 0], sizes = [16, 32], strides = [1, 1]} : vector<16x96xf32> to vector<16x32xf32>
    %282 = arith.addf %280, %281 : vector<16x32xf32>
    %283 = arith.negf %282 : vector<16x32xf32>
    %284 = math.exp %283 : vector<16x32xf32>
    %cst_108 = arith.constant 1.000000e+00 : f32
    %285 = vector.broadcast %cst_108 : f32 to vector<16x32xf32>
    %286 = arith.addf %285, %284 : vector<16x32xf32>
    %287 = arith.divf %285, %286 : vector<16x32xf32>
    %288 = vector.extract_strided_slice %272 {offsets = [0, 32], sizes = [16, 32], strides = [1, 1]} : vector<16x96xf32> to vector<16x32xf32>
    %289 = vector.extract_strided_slice %279 {offsets = [0, 32], sizes = [16, 32], strides = [1, 1]} : vector<16x96xf32> to vector<16x32xf32>
    %290 = arith.addf %288, %289 : vector<16x32xf32>
    %291 = arith.negf %290 : vector<16x32xf32>
    %292 = math.exp %291 : vector<16x32xf32>
    %cst_109 = arith.constant 1.000000e+00 : f32
    %293 = vector.broadcast %cst_109 : f32 to vector<16x32xf32>
    %294 = arith.addf %293, %292 : vector<16x32xf32>
    %295 = arith.divf %293, %294 : vector<16x32xf32>
    %296 = vector.extract_strided_slice %272 {offsets = [0, 64], sizes = [16, 32], strides = [1, 1]} : vector<16x96xf32> to vector<16x32xf32>
    %297 = vector.extract_strided_slice %279 {offsets = [0, 64], sizes = [16, 32], strides = [1, 1]} : vector<16x96xf32> to vector<16x32xf32>
    %298 = arith.mulf %287, %297 : vector<16x32xf32>
    %299 = arith.addf %296, %298 : vector<16x32xf32>
    %300 = math.tanh %299 : vector<16x32xf32>
    %cst_110 = arith.constant 1.000000e+00 : f32
    %301 = vector.broadcast %cst_110 : f32 to vector<16x32xf32>
    %302 = arith.subf %301, %295 : vector<16x32xf32>
    %303 = arith.mulf %302, %300 : vector<16x32xf32>
    %304 = arith.mulf %295, %213 : vector<16x32xf32>
    %305 = arith.addf %303, %304 : vector<16x32xf32>
    %c0_111 = arith.constant 0 : index
    %c0_112 = arith.constant 0 : index
    %306 = vector.load %arg11[%c0_111, %c0_112] : memref<16x32xf32, #tpu.memory_space<vmem>>, vector<16x32xf32>
    tpu.vector_store %arg11[%c0_111, %c0_112], %305 {strides = array<i32>} : memref<16x32xf32, #tpu.memory_space<vmem>>, vector<16x32xf32>,
    return
  }
}

</mosaic_0001>

<llo_original>
// kernel: tpu_custom_call.1
$region0: #{tpu_custom_call.1}
  #allocation0 [shape = 'u32[]', space=smem, size = 0x4, offset = 0x4, fixed_abs, tag = 'smem constant byte address 0x4 - core index']
  #allocation1 [shape = 'u32[144,128]{1,0:T(1,128)}', space=vmem, size = 0x12000, scoped, tag = 'internal scratch']
  %s0 = inlined_call_operand.vmem [shape: f32[128,32], index: 0, kind: input, shape index: {}]
  %s1 = inlined_call_operand.vmem [shape: f32[16,32], index: 1, kind: input, shape index: {}]
  %s2 = inlined_call_operand.vmem [shape: f32[16,128], index: 2, kind: input, shape index: {}]
  %s3 = inlined_call_operand.vmem [shape: f32[32,64], index: 3, kind: input, shape index: {}]
  %s4 = inlined_call_operand.vmem [shape: f32[1,64], index: 4, kind: input, shape index: {}]
  %s5 = inlined_call_operand.vmem [shape: f32[32,32], index: 5, kind: input, shape index: {}]
  %s6 = inlined_call_operand.vmem [shape: f32[1,32], index: 6, kind: input, shape index: {}]
  %s7 = inlined_call_operand.vmem [shape: f32[32,96], index: 7, kind: input, shape index: {}]
  %s8 = inlined_call_operand.vmem [shape: f32[32,96], index: 8, kind: input, shape index: {}]
  %s9 = inlined_call_operand.vmem [shape: f32[1,96], index: 9, kind: input, shape index: {}]
  %s10 = inlined_call_operand.vmem [shape: f32[1,96], index: 10, kind: input, shape index: {}]
  %s11 = inlined_call_operand.hbm [shape: f32[16,32], index: 11, kind: output, shape index: {0}]
  %s12 = inlined_call_operand.hbm [shape: f32[3,16,128], index: 12, kind: output, shape index: {1}]
  %13 = xla_tuple %s11, %s12
  %s14 = sld [smem:[#allocation0]]
  $region62: #{tpu_custom_call.1} parent=0
    _
  %s16 = ssub.s32 1, %s14
  %s17 = scalar_select 0, %s16, %s14
  $region1: #{tpu_custom_call.1} parent=0
    #allocation2 [shape = 'u8[8192]{0}', space=vmem, size = 0x2000, scoped, tag = 'output window, operand 0, single buffered']
    #allocation3 [shape = 's32[1]{0}', space=sflag, size = 0x4, scoped, tag = 'scoped memory for tpu_custom_call.1']
    #allocation4 [shape = 'u8[24576]{0}', space=vmem, size = 0x6000, scoped, tag = 'output window, operand 1, single buffered']
    #allocation5 [shape = 's32[1]{0}', space=sflag, size = 0x4, scoped, tag = 'scoped memory for tpu_custom_call.1']
    %18 = vsyncpa [#allocation3], 0
    %19 = vsyncpa [#allocation5], 0
    // Predicated region
    $region2: #{tpu_custom_call.1} parent=1 // pred_check
      _
    $region3: #{tpu_custom_call.1} parent=1 // pred_check_branch
      %21 = sbr.rel (0) target = $region5
    $region4: #{tpu_custom_call.1} parent=1 // pred_region
      _
    $region5: #{tpu_custom_call.1} parent=1 // pred_fallthru
      _
    // Predicated region
    $region6: #{tpu_custom_call.1} parent=1 // pred_check
      _
    $region7: #{tpu_custom_call.1} parent=1 // pred_check_branch
      %23 = sbr.rel (0) target = $region9
    $region8: #{tpu_custom_call.1} parent=1 // pred_region
      _
    $region9: #{tpu_custom_call.1} parent=1 // pred_fallthru
      _
    // Predicated region
    $region10: #{tpu_custom_call.1} parent=1 // pred_check
      _
    $region11: #{tpu_custom_call.1} parent=1 // pred_check_branch
      %25 = sbr.rel (0) target = $region13
    $region12: #{tpu_custom_call.1} parent=1 // pred_region
      _
    $region13: #{tpu_custom_call.1} parent=1 // pred_fallthru
      _
    // Predicated region
    $region14: #{tpu_custom_call.1} parent=1 // pred_check
      _
    $region15: #{tpu_custom_call.1} parent=1 // pred_check_branch
      %27 = sbr.rel (0) target = $region17
    $region16: #{tpu_custom_call.1} parent=1 // pred_region
      _
    $region17: #{tpu_custom_call.1} parent=1 // pred_fallthru
      _
    // Predicated region
    $region18: #{tpu_custom_call.1} parent=1 // pred_check
      _
    $region19: #{tpu_custom_call.1} parent=1 // pred_check_branch
      %29 = sbr.rel (0) target = $region21
    $region20: #{tpu_custom_call.1} parent=1 // pred_region
      _
    $region21: #{tpu_custom_call.1} parent=1 // pred_fallthru
      _
    // Predicated region
    $region22: #{tpu_custom_call.1} parent=1 // pred_check
      _
    $region23: #{tpu_custom_call.1} parent=1 // pred_check_branch
      %31 = sbr.rel (0) target = $region25
    $region24: #{tpu_custom_call.1} parent=1 // pred_region
      _
    $region25: #{tpu_custom_call.1} parent=1 // pred_fallthru
      _
    // Predicated region
    $region26: #{tpu_custom_call.1} parent=1 // pred_check
      _
    $region27: #{tpu_custom_call.1} parent=1 // pred_check_branch
      %33 = sbr.rel (0) target = $region29
    $region28: #{tpu_custom_call.1} parent=1 // pred_region
      _
    $region29: #{tpu_custom_call.1} parent=1 // pred_fallthru
      _
    // Predicated region
    $region30: #{tpu_custom_call.1} parent=1 // pred_check
      _
    $region31: #{tpu_custom_call.1} parent=1 // pred_check_branch
      %35 = sbr.rel (0) target = $region33
    $region32: #{tpu_custom_call.1} parent=1 // pred_region
      _
    $region33: #{tpu_custom_call.1} parent=1 // pred_fallthru
      _
    // Predicated region
    $region34: #{tpu_custom_call.1} parent=1 // pred_check
      _
    $region35: #{tpu_custom_call.1} parent=1 // pred_check_branch
      %37 = sbr.rel (0) target = $region37
    $region36: #{tpu_custom_call.1} parent=1 // pred_region
      _
    $region37: #{tpu_custom_call.1} parent=1 // pred_fallthru
      _
    // Predicated region
    $region38: #{tpu_custom_call.1} parent=1 // pred_check
      _
    $region39: #{tpu_custom_call.1} parent=1 // pred_check_branch
      %39 = sbr.rel (0) target = $region41
    $region40: #{tpu_custom_call.1} parent=1 // pred_region
      _
    $region41: #{tpu_custom_call.1} parent=1 // pred_fallthru
      _
    // Predicated region
    $region42: #{tpu_custom_call.1} parent=1 // pred_check
      _
    $region43: #{tpu_custom_call.1} parent=1 // pred_check_branch
      %41 = sbr.rel (0) target = $region45
    $region44: #{tpu_custom_call.1} parent=1 // pred_region
      _
    $region45: #{tpu_custom_call.1} parent=1 // pred_fallthru
      _
    %v42 = vld [vmem:[%s0] sm:$0xff]
    %v43 = vld [vmem:[%s0 + $0x8] sm:$0xff]
    %v44 = vld [vmem:[%s0 + $0x10] sm:$0xff]
    %v45 = vld [vmem:[%s0 + $0x18] sm:$0xff]
    %v46 = vld [vmem:[%s0 + $0x20] sm:$0xff]
    %v47 = vld [vmem:[%s0 + $0x28] sm:$0xff]
    %v48 = vld [vmem:[%s0 + $0x30] sm:$0xff]
    %v49 = vld [vmem:[%s0 + $0x38] sm:$0xff]
    %v50 = vld [vmem:[%s0 + $0x40] sm:$0xff]
    %v51 = vld [vmem:[%s0 + $0x48] sm:$0xff]
    %v52 = vld [vmem:[%s0 + $0x50] sm:$0xff]
    %v53 = vld [vmem:[%s0 + $0x58] sm:$0xff]
    %v54 = vld [vmem:[%s0 + $0x60] sm:$0xff]
    %v55 = vld [vmem:[%s0 + $0x68] sm:$0xff]
    %v56 = vld [vmem:[%s0 + $0x70] sm:$0xff]
    %v57 = vld [vmem:[%s0 + $0x78] sm:$0xff]
    %vm58 = vcmask 261120
    %v59 = vsel %vm58, %v42, 0.0
    %60 = vadd.xlane.f32.xlu0 %v59
    %v61 = vpop.xlane.xlu0 %60
    %v62 = vsel %vm58, %v43, 0.0
    %63 = vadd.xlane.f32.xlu0 %v62
    %v64 = vpop.xlane.xlu0 %63
    %v65 = vsel %vm58, %v44, 0.0
    %66 = vadd.xlane.f32.xlu0 %v65
    %v67 = vpop.xlane.xlu0 %66
    %v68 = vsel %vm58, %v45, 0.0
    %69 = vadd.xlane.f32.xlu0 %v68
    %v70 = vpop.xlane.xlu0 %69
    %v71 = vsel %vm58, %v46, 0.0
    %72 = vadd.xlane.f32.xlu0 %v71
    %v73 = vpop.xlane.xlu0 %72
    %v74 = vsel %vm58, %v47, 0.0
    %75 = vadd.xlane.f32.xlu0 %v74
    %v76 = vpop.xlane.xlu0 %75
    %v77 = vsel %vm58, %v48, 0.0
    %78 = vadd.xlane.f32.xlu0 %v77
    %v79 = vpop.xlane.xlu0 %78
    %v80 = vsel %vm58, %v49, 0.0
    %81 = vadd.xlane.f32.xlu0 %v80
    %v82 = vpop.xlane.xlu0 %81
    %v83 = vsel %vm58, %v50, 0.0
    %84 = vadd.xlane.f32.xlu0 %v83
    %v85 = vpop.xlane.xlu0 %84
    %v86 = vsel %vm58, %v51, 0.0
    %87 = vadd.xlane.f32.xlu0 %v86
    %v88 = vpop.xlane.xlu0 %87
    %v89 = vsel %vm58, %v52, 0.0
    %90 = vadd.xlane.f32.xlu0 %v89
    %v91 = vpop.xlane.xlu0 %90
    %v92 = vsel %vm58, %v53, 0.0
    %93 = vadd.xlane.f32.xlu0 %v92
    %v94 = vpop.xlane.xlu0 %93
    %v95 = vsel %vm58, %v54, 0.0
    %96 = vadd.xlane.f32.xlu0 %v95
    %v97 = vpop.xlane.xlu0 %96
    %v98 = vsel %vm58, %v55, 0.0
    %99 = vadd.xlane.f32.xlu0 %v98
    %v100 = vpop.xlane.xlu0 %99
    %v101 = vsel %vm58, %v56, 0.0
    %102 = vadd.xlane.f32.xlu0 %v101
    %v103 = vpop.xlane.xlu0 %102
    %v104 = vsel %vm58, %v57, 0.0
    %105 = vadd.xlane.f32.xlu0 %v104
    %v106 = vpop.xlane.xlu0 %105
    %v107 = vrcp.pop 32.0
    %v108 = vmul.f32 %v61, %v107
    %v109 = vmul.f32 %v64, %v107
    %v110 = vmul.f32 %v67, %v107
    %v111 = vmul.f32 %v70, %v107
    %v112 = vmul.f32 %v73, %v107
    %v113 = vmul.f32 %v76, %v107
    %v114 = vmul.f32 %v79, %v107
    %v115 = vmul.f32 %v82, %v107
    %v116 = vmul.f32 %v85, %v107
    %v117 = vmul.f32 %v88, %v107
    %v118 = vmul.f32 %v91, %v107
    %v119 = vmul.f32 %v94, %v107
    %v120 = vmul.f32 %v97, %v107
    %v121 = vmul.f32 %v100, %v107
    %v122 = vmul.f32 %v103, %v107
    %v123 = vmul.f32 %v106, %v107
    %v124 = vsub.f32 %v42, %v108
    %v125 = vsub.f32 %v43, %v109
    %v126 = vsub.f32 %v44, %v110
    %v127 = vsub.f32 %v45, %v111
    %v128 = vsub.f32 %v46, %v112
    %v129 = vsub.f32 %v47, %v113
    %v130 = vsub.f32 %v48, %v114
    %v131 = vsub.f32 %v49, %v115
    %v132 = vsub.f32 %v50, %v116
    %v133 = vsub.f32 %v51, %v117
    %v134 = vsub.f32 %v52, %v118
    %v135 = vsub.f32 %v53, %v119
    %v136 = vsub.f32 %v54, %v120
    %v137 = vsub.f32 %v55, %v121
    %v138 = vsub.f32 %v56, %v122
    %v139 = vsub.f32 %v57, %v123
    %v140 = vmul.f32 %v124, %v124
    %v141 = vmul.f32 %v125, %v125
    %v142 = vmul.f32 %v126, %v126
    %v143 = vmul.f32 %v127, %v127
    %v144 = vmul.f32 %v128, %v128
    %v145 = vmul.f32 %v129, %v129
    %v146 = vmul.f32 %v130, %v130
    %v147 = vmul.f32 %v131, %v131
    %v148 = vmul.f32 %v132, %v132
    %v149 = vmul.f32 %v133, %v133
    %v150 = vmul.f32 %v134, %v134
    %v151 = vmul.f32 %v135, %v135
    %v152 = vmul.f32 %v136, %v136
    %v153 = vmul.f32 %v137, %v137
    %v154 = vmul.f32 %v138, %v138
    %v155 = vmul.f32 %v139, %v139
    %v156 = vsel %vm58, %v140, 0.0
    %157 = vadd.xlane.f32.xlu0 %v156
    %v158 = vpop.xlane.xlu0 %157
    %v159 = vsel %vm58, %v141, 0.0
    %160 = vadd.xlane.f32.xlu0 %v159
    %v161 = vpop.xlane.xlu0 %160
    %v162 = vsel %vm58, %v142, 0.0
    %163 = vadd.xlane.f32.xlu0 %v162
    %v164 = vpop.xlane.xlu0 %163
    %v165 = vsel %vm58, %v143, 0.0
    %166 = vadd.xlane.f32.xlu0 %v165
    %v167 = vpop.xlane.xlu0 %166
    %v168 = vsel %vm58, %v144, 0.0
    %169 = vadd.xlane.f32.xlu0 %v168
    %v170 = vpop.xlane.xlu0 %169
    %v171 = vsel %vm58, %v145, 0.0
    %172 = vadd.xlane.f32.xlu0 %v171
    %v173 = vpop.xlane.xlu0 %172
    %v174 = vsel %vm58, %v146, 0.0
    %175 = vadd.xlane.f32.xlu0 %v174
    %v176 = vpop.xlane.xlu0 %175
    %v177 = vsel %vm58, %v147, 0.0
    %178 = vadd.xlane.f32.xlu0 %v177
    %v179 = vpop.xlane.xlu0 %178
    %v180 = vsel %vm58, %v148, 0.0
    %181 = vadd.xlane.f32.xlu0 %v180
    %v182 = vpop.xlane.xlu0 %181
    %v183 = vsel %vm58, %v149, 0.0
    %184 = vadd.xlane.f32.xlu0 %v183
    %v185 = vpop.xlane.xlu0 %184
    %v186 = vsel %vm58, %v150, 0.0
    %187 = vadd.xlane.f32.xlu0 %v186
    %v188 = vpop.xlane.xlu0 %187
    %v189 = vsel %vm58, %v151, 0.0
    %190 = vadd.xlane.f32.xlu0 %v189
    %v191 = vpop.xlane.xlu0 %190
    %v192 = vsel %vm58, %v152, 0.0
    %193 = vadd.xlane.f32.xlu0 %v192
    %v194 = vpop.xlane.xlu0 %193
    %v195 = vsel %vm58, %v153, 0.0
    %196 = vadd.xlane.f32.xlu0 %v195
    %v197 = vpop.xlane.xlu0 %196
    %v198 = vsel %vm58, %v154, 0.0
    %199 = vadd.xlane.f32.xlu0 %v198
    %v200 = vpop.xlane.xlu0 %199
    %v201 = vsel %vm58, %v155, 0.0
    %202 = vadd.xlane.f32.xlu0 %v201
    %v203 = vpop.xlane.xlu0 %202
    %v204 = vmul.f32 %v158, %v107
    %v205 = vmul.f32 %v161, %v107
    %v206 = vmul.f32 %v164, %v107
    %v207 = vmul.f32 %v167, %v107
    %v208 = vmul.f32 %v170, %v107
    %v209 = vmul.f32 %v173, %v107
    %v210 = vmul.f32 %v176, %v107
    %v211 = vmul.f32 %v179, %v107
    %v212 = vmul.f32 %v182, %v107
    %v213 = vmul.f32 %v185, %v107
    %v214 = vmul.f32 %v188, %v107
    %v215 = vmul.f32 %v191, %v107
    %v216 = vmul.f32 %v194, %v107
    %v217 = vmul.f32 %v197, %v107
    %v218 = vmul.f32 %v200, %v107
    %v219 = vmul.f32 %v203, %v107
    %v220 = vadd.f32 %v204, 1e-05
    %v221 = vadd.f32 %v205, 1e-05
    %v222 = vadd.f32 %v206, 1e-05
    %v223 = vadd.f32 %v207, 1e-05
    %v224 = vadd.f32 %v208, 1e-05
    %v225 = vadd.f32 %v209, 1e-05
    %v226 = vadd.f32 %v210, 1e-05
    %v227 = vadd.f32 %v211, 1e-05
    %v228 = vadd.f32 %v212, 1e-05
    %v229 = vadd.f32 %v213, 1e-05
    %v230 = vadd.f32 %v214, 1e-05
    %v231 = vadd.f32 %v215, 1e-05
    %v232 = vadd.f32 %v216, 1e-05
    %v233 = vadd.f32 %v217, 1e-05
    %v234 = vadd.f32 %v218, 1e-05
    %v235 = vadd.f32 %v219, 1e-05
    %v236 = vrsqrt.pop %v220
    %v237 = vrsqrt.pop %v221
    %v238 = vrsqrt.pop %v222
    %v239 = vrsqrt.pop %v223
    %v240 = vrsqrt.pop %v224
    %v241 = vrsqrt.pop %v225
    %v242 = vrsqrt.pop %v226
    %v243 = vrsqrt.pop %v227
    %v244 = vrsqrt.pop %v228
    %v245 = vrsqrt.pop %v229
    %v246 = vrsqrt.pop %v230
    %v247 = vrsqrt.pop %v231
    %v248 = vrsqrt.pop %v232
    %v249 = vrsqrt.pop %v233
    %v250 = vrsqrt.pop %v234
    %v251 = vrsqrt.pop %v235
    %v252 = vmul.f32 %v124, %v236
    %v253 = vmul.f32 %v125, %v237
    %v254 = vmul.f32 %v126, %v238
    %v255 = vmul.f32 %v127, %v239
    %v256 = vmul.f32 %v128, %v240
    %v257 = vmul.f32 %v129, %v241
    %v258 = vmul.f32 %v130, %v242
    %v259 = vmul.f32 %v131, %v243
    %v260 = vmul.f32 %v132, %v244
    %v261 = vmul.f32 %v133, %v245
    %v262 = vmul.f32 %v134, %v246
    %v263 = vmul.f32 %v135, %v247
    %v264 = vmul.f32 %v136, %v248
    %v265 = vmul.f32 %v137, %v249
    %v266 = vmul.f32 %v138, %v250
    %v267 = vmul.f32 %v139, %v251
    %v268 = vld [vmem:[%s3] sm:$0xff]
    %v269 = vld [vmem:[%s3 + $0x8] sm:$0xff]
    %v270 = vld [vmem:[%s3 + $0x10] sm:$0xff]
    %v271 = vld [vmem:[%s3 + $0x18] sm:$0xff]
    %v272 = vld [vmem:[%s4] sm:$0x1]
    %v274 = vlaneseq
    %v275 = vshrl.u32 %v274, 7
    %v276 = vsub.s32 0, %v275
    %v277 = vrot.slane %v272, %v276
    %v280 = vsel %vm58, %v252, 0
    %v283 = vsel %vm58, %v253, 0
    %v286 = vsel %vm58, %v254, 0
    %v289 = vsel %vm58, %v255, 0
    %v292 = vsel %vm58, %v256, 0
    %v295 = vsel %vm58, %v257, 0
    %v298 = vsel %vm58, %v258, 0
    %v301 = vsel %vm58, %v259, 0
    %v304 = vsel %vm58, %v260, 0
    %v307 = vsel %vm58, %v261, 0
    %v310 = vsel %vm58, %v262, 0
    %v313 = vsel %vm58, %v263, 0
    %v316 = vsel %vm58, %v264, 0
    %v319 = vsel %vm58, %v265, 0
    %v322 = vsel %vm58, %v266, 0
    %v325 = vsel %vm58, %v267, 0
    %327 = vmatprep.subr.mxu0 0.0
    %328 = vmatpush1.msra.mxu0 %v268
    %329 = vmatprep.subr.mxu0 0.0
    %330 = vmatpush1.msra.mxu0 %v269
    %331 = vmatprep.subr.mxu0 0.0
    %332 = vmatpush1.msra.mxu0 %v270
    %333 = vmatprep.subr.mxu0 0.0
    %334 = vmatpush1.msra.mxu0 %v271
    %335 = vmatprep.subr.mxu0 0.0
    %336 = vmatpush1.msra.mxu0 0.0
    %337 = vmatprep.subr.mxu0 0.0
    %338 = vmatpush1.msra.mxu0 0.0
    %339 = vmatprep.subr.mxu0 0.0
    %340 = vmatpush1.msra.mxu0 0.0
    %341 = vmatprep.subr.mxu0 0.0
    %342 = vmatpush1.msra.mxu0 0.0
    %343 = vmatprep.subr.mxu0 0.0
    %344 = vmatpush1.msra.mxu0 0.0
    %345 = vmatprep.subr.mxu0 0.0
    %346 = vmatpush1.msra.mxu0 0.0
    %347 = vmatprep.subr.mxu0 0.0
    %348 = vmatpush1.msra.mxu0 0.0
    %349 = vmatprep.subr.mxu0 0.0
    %350 = vmatpush1.msra.mxu0 0.0
    %351 = vmatprep.subr.mxu0 0.0
    %352 = vmatpush1.msra.mxu0 0.0
    %353 = vmatprep.subr.mxu0 0.0
    %354 = vmatpush1.msra.mxu0 0.0
    %355 = vmatprep.subr.mxu0 0.0
    %356 = vmatpush1.msra.mxu0 0.0
    %357 = vmatprep.subr.mxu0 0.0
    %358 = vmatpush1.msra.mxu0 0.0
    %359 = vmatprep.subr.mxu0 0.0
    %360 = vmatpush1.msra.mxu0 0.0
    %361 = vmatprep.subr.mxu0 0.0
    %362 = vmatpush1.msra.mxu0 0.0
    %363 = vmatprep.subr.mxu0 0.0
    %364 = vmatpush1.msra.mxu0 0.0
    %365 = vmatprep.subr.mxu0 0.0
    %366 = vmatpush1.msra.mxu0 0.0
    %367 = vmatprep.subr.mxu0 0.0
    %368 = vmatpush1.msra.mxu0 0.0
    %369 = vmatprep.subr.mxu0 0.0
    %370 = vmatpush1.msra.mxu0 0.0
    %371 = vmatprep.subr.mxu0 0.0
    %372 = vmatpush1.msra.mxu0 0.0
    %373 = vmatprep.subr.mxu0 0.0
    %374 = vmatpush1.msra.mxu0 0.0
    %375 = vmatprep.subr.mxu0 0.0
    %376 = vmatpush1.msra.mxu0 0.0
    %377 = vmatprep.subr.mxu0 0.0
    %378 = vmatpush1.msra.mxu0 0.0
    %379 = vmatprep.subr.mxu0 0.0
    %380 = vmatpush1.msra.mxu0 0.0
    %381 = vmatprep.subr.mxu0 0.0
    %382 = vmatpush1.msra.mxu0 0.0
    %383 = vmatprep.subr.mxu0 0.0
    %384 = vmatpush1.msra.mxu0 0.0
    %385 = vmatprep.subr.mxu0 0.0
    %386 = vmatpush1.msra.mxu0 0.0
    %387 = vmatprep.subr.mxu0 0.0
    %388 = vmatpush1.msra.mxu0 0.0
    %389 = vmatprep.subr.mxu0 0.0
    %390 = vmatpush1.msra.mxu0 0.0
    %391 = vmatprep.mubr.f32.mxu0 0.0
    %392 = vmatmul.mubr.f32.gmra.mrb[0].mxu0 %v280
    %v393 = vpop.f32.mrb[0].mxu0
    %v394 = vadd.f32 %v277, %v393
    %v395 = vpop.f32.mrb[0].mxu0
    %396 = vmatprep.mubr.f32.mxu0 0.0
    %397 = vmatmul.mubr.f32.gmra.mrb[0].mxu0 %v283
    %v398 = vpop.f32.mrb[0].mxu0
    %v399 = vadd.f32 %v277, %v398
    %v400 = vpop.f32.mrb[0].mxu0
    %401 = vmatprep.mubr.f32.mxu0 0.0
    %402 = vmatmul.mubr.f32.gmra.mrb[0].mxu0 %v286
    %v403 = vpop.f32.mrb[0].mxu0
    %v404 = vadd.f32 %v277, %v403
    %v405 = vpop.f32.mrb[0].mxu0
    %406 = vmatprep.mubr.f32.mxu0 0.0
    %407 = vmatmul.mubr.f32.gmra.mrb[0].mxu0 %v289
    %v408 = vpop.f32.mrb[0].mxu0
    %v409 = vadd.f32 %v277, %v408
    %v410 = vpop.f32.mrb[0].mxu0
    %411 = vmatprep.mubr.f32.mxu0 0.0
    %412 = vmatmul.mubr.f32.gmra.mrb[0].mxu0 %v292
    %v413 = vpop.f32.mrb[0].mxu0
    %v414 = vadd.f32 %v277, %v413
    %v415 = vpop.f32.mrb[0].mxu0
    %416 = vmatprep.mubr.f32.mxu0 0.0
    %417 = vmatmul.mubr.f32.gmra.mrb[0].mxu0 %v295
    %v418 = vpop.f32.mrb[0].mxu0
    %v419 = vadd.f32 %v277, %v418
    %v420 = vpop.f32.mrb[0].mxu0
    %421 = vmatprep.mubr.f32.mxu0 0.0
    %422 = vmatmul.mubr.f32.gmra.mrb[0].mxu0 %v298
    %v423 = vpop.f32.mrb[0].mxu0
    %v424 = vadd.f32 %v277, %v423
    %v425 = vpop.f32.mrb[0].mxu0
    %426 = vmatprep.mubr.f32.mxu0 0.0
    %427 = vmatmul.mubr.f32.gmra.mrb[0].mxu0 %v301
    %v428 = vpop.f32.mrb[0].mxu0
    %v429 = vadd.f32 %v277, %v428
    %v430 = vpop.f32.mrb[0].mxu0
    %431 = vmatprep.mubr.f32.mxu0 0.0
    %432 = vmatmul.mubr.f32.gmra.mrb[0].mxu0 %v304
    %v433 = vpop.f32.mrb[0].mxu0
    %v434 = vadd.f32 %v277, %v433
    %v435 = vpop.f32.mrb[0].mxu0
    %436 = vmatprep.mubr.f32.mxu0 0.0
    %437 = vmatmul.mubr.f32.gmra.mrb[0].mxu0 %v307
    %v438 = vpop.f32.mrb[0].mxu0
    %v439 = vadd.f32 %v277, %v438
    %v440 = vpop.f32.mrb[0].mxu0
    %441 = vmatprep.mubr.f32.mxu0 0.0
    %442 = vmatmul.mubr.f32.gmra.mrb[0].mxu0 %v310
    %v443 = vpop.f32.mrb[0].mxu0
    %v444 = vadd.f32 %v277, %v443
    %v445 = vpop.f32.mrb[0].mxu0
    %446 = vmatprep.mubr.f32.mxu0 0.0
    %447 = vmatmul.mubr.f32.gmra.mrb[0].mxu0 %v313
    %v448 = vpop.f32.mrb[0].mxu0
    %v449 = vadd.f32 %v277, %v448
    %v450 = vpop.f32.mrb[0].mxu0
    %451 = vmatprep.mubr.f32.mxu0 0.0
    %452 = vmatmul.mubr.f32.gmra.mrb[0].mxu0 %v316
    %v453 = vpop.f32.mrb[0].mxu0
    %v454 = vadd.f32 %v277, %v453
    %v455 = vpop.f32.mrb[0].mxu0
    %456 = vmatprep.mubr.f32.mxu0 0.0
    %457 = vmatmul.mubr.f32.gmra.mrb[0].mxu0 %v319
    %v458 = vpop.f32.mrb[0].mxu0
    %v459 = vadd.f32 %v277, %v458
    %v460 = vpop.f32.mrb[0].mxu0
    %461 = vmatprep.mubr.f32.mxu0 0.0
    %462 = vmatmul.mubr.f32.gmra.mrb[0].mxu0 %v322
    %v463 = vpop.f32.mrb[0].mxu0
    %v464 = vadd.f32 %v277, %v463
    %v465 = vpop.f32.mrb[0].mxu0
    %466 = vmatprep.mubr.f32.mxu0 0.0
    %467 = vmatmul.mubr.f32.gmra.mrb[0].mxu0 %v325
    %v468 = vpop.f32.mrb[0].mxu0
    %v469 = vadd.f32 %v277, %v468
    %v470 = vpop.f32.mrb[0].mxu0
    %471 = vdwg.mxu0
    %v472 = vld [vmem:[%s2] sm:$0xff]
    %v473 = vld [vmem:[%s2 + $0x8] sm:$0xff]
    %v474 = vld [vmem:[%s1] sm:$0xff]
    %v475 = vld [vmem:[%s1 + $0x8] sm:$0xff]
    %v476 = vsel %vm58, %v474, 0.0
    %477 = vadd.xlane.f32.xlu0 %v476
    %v478 = vpop.xlane.xlu0 %477
    %v479 = vsel %vm58, %v475, 0.0
    %480 = vadd.xlane.f32.xlu0 %v479
    %v481 = vpop.xlane.xlu0 %480
    %v482 = vmul.f32 %v478, %v107
    %v483 = vmul.f32 %v481, %v107
    %v484 = vsub.f32 %v474, %v482
    %v485 = vsub.f32 %v475, %v483
    %v486 = vmul.f32 %v484, %v484
    %v487 = vmul.f32 %v485, %v485
    %v488 = vsel %vm58, %v486, 0.0
    %489 = vadd.xlane.f32.xlu0 %v488
    %v490 = vpop.xlane.xlu0 %489
    %v491 = vsel %vm58, %v487, 0.0
    %492 = vadd.xlane.f32.xlu0 %v491
    %v493 = vpop.xlane.xlu0 %492
    %v494 = vmul.f32 %v490, %v107
    %v495 = vmul.f32 %v493, %v107
    %v496 = vadd.f32 %v494, 1e-05
    %v497 = vadd.f32 %v495, 1e-05
    %v498 = vrsqrt.pop %v496
    %v499 = vrsqrt.pop %v497
    %v500 = vmul.f32 %v484, %v498
    %v501 = vmul.f32 %v485, %v499
    %v502 = vld [vmem:[%s5] sm:$0xff]
    %v503 = vld [vmem:[%s5 + $0x8] sm:$0xff]
    %v504 = vld [vmem:[%s5 + $0x10] sm:$0xff]
    %v505 = vld [vmem:[%s5 + $0x18] sm:$0xff]
    %v506 = vld [vmem:[%s6] sm:$0x1]
    %v508 = vlaneseq
    %v509 = vshrl.u32 %v508, 7
    %v510 = vsub.s32 0, %v509
    %v511 = vrot.slane %v506, %v510
    %v514 = vsel %vm58, %v500, 0
    %v517 = vsel %vm58, %v501, 0
    %519 = vmatprep.subr.mxu0 0.0
    %520 = vmatpush1.msra.mxu0 %v502
    %521 = vmatprep.subr.mxu0 0.0
    %522 = vmatpush1.msra.mxu0 %v503
    %523 = vmatprep.subr.mxu0 0.0
    %524 = vmatpush1.msra.mxu0 %v504
    %525 = vmatprep.subr.mxu0 0.0
    %526 = vmatpush1.msra.mxu0 %v505
    %527 = vmatprep.subr.mxu0 0.0
    %528 = vmatpush1.msra.mxu0 0.0
    %529 = vmatprep.subr.mxu0 0.0
    %530 = vmatpush1.msra.mxu0 0.0
    %531 = vmatprep.subr.mxu0 0.0
    %532 = vmatpush1.msra.mxu0 0.0
    %533 = vmatprep.subr.mxu0 0.0
    %534 = vmatpush1.msra.mxu0 0.0
    %535 = vmatprep.subr.mxu0 0.0
    %536 = vmatpush1.msra.mxu0 0.0
    %537 = vmatprep.subr.mxu0 0.0
    %538 = vmatpush1.msra.mxu0 0.0
    %539 = vmatprep.subr.mxu0 0.0
    %540 = vmatpush1.msra.mxu0 0.0
    %541 = vmatprep.subr.mxu0 0.0
    %542 = vmatpush1.msra.mxu0 0.0
    %543 = vmatprep.subr.mxu0 0.0
    %544 = vmatpush1.msra.mxu0 0.0
    %545 = vmatprep.subr.mxu0 0.0
    %546 = vmatpush1.msra.mxu0 0.0
    %547 = vmatprep.subr.mxu0 0.0
    %548 = vmatpush1.msra.mxu0 0.0
    %549 = vmatprep.subr.mxu0 0.0
    %550 = vmatpush1.msra.mxu0 0.0
    %551 = vmatprep.subr.mxu0 0.0
    %552 = vmatpush1.msra.mxu0 0.0
    %553 = vmatprep.subr.mxu0 0.0
    %554 = vmatpush1.msra.mxu0 0.0
    %555 = vmatprep.subr.mxu0 0.0
    %556 = vmatpush1.msra.mxu0 0.0
    %557 = vmatprep.subr.mxu0 0.0
    %558 = vmatpush1.msra.mxu0 0.0
    %559 = vmatprep.subr.mxu0 0.0
    %560 = vmatpush1.msra.mxu0 0.0
    %561 = vmatprep.subr.mxu0 0.0
    %562 = vmatpush1.msra.mxu0 0.0
    %563 = vmatprep.subr.mxu0 0.0
    %564 = vmatpush1.msra.mxu0 0.0
    %565 = vmatprep.subr.mxu0 0.0
    %566 = vmatpush1.msra.mxu0 0.0
    %567 = vmatprep.subr.mxu0 0.0
    %568 = vmatpush1.msra.mxu0 0.0
    %569 = vmatprep.subr.mxu0 0.0
    %570 = vmatpush1.msra.mxu0 0.0
    %571 = vmatprep.subr.mxu0 0.0
    %572 = vmatpush1.msra.mxu0 0.0
    %573 = vmatprep.subr.mxu0 0.0
    %574 = vmatpush1.msra.mxu0 0.0
    %575 = vmatprep.subr.mxu0 0.0
    %576 = vmatpush1.msra.mxu0 0.0
    %577 = vmatprep.subr.mxu0 0.0
    %578 = vmatpush1.msra.mxu0 0.0
    %579 = vmatprep.subr.mxu0 0.0
    %580 = vmatpush1.msra.mxu0 0.0
    %581 = vmatprep.subr.mxu0 0.0
    %582 = vmatpush1.msra.mxu0 0.0
    %583 = vmatprep.mubr.f32.mxu0 0.0
    %584 = vmatmul.mubr.f32.gmra.mrb[0].mxu0 %v514
    %v585 = vpop.f32.mrb[0].mxu0
    %v586 = vadd.f32 %v511, %v585
    %v587 = vpop.f32.mrb[0].mxu0
    %588 = vmatprep.mubr.f32.mxu0 0.0
    %589 = vmatmul.mubr.f32.gmra.mrb[0].mxu0 %v517
    %v590 = vpop.f32.mrb[0].mxu0
    %v591 = vadd.f32 %v511, %v590
    %v592 = vpop.f32.mrb[0].mxu0
    %593 = vdwg.mxu0
    %v595 = vsel %vm58, %v586, 0
    %v598 = vsel %vm58, %v591, 0
    %v601 = vsel %vm58, %v394, 0
    %v604 = vsel %vm58, %v399, 0
    %v607 = vsel %vm58, %v404, 0
    %v610 = vsel %vm58, %v409, 0
    %v613 = vsel %vm58, %v414, 0
    %v616 = vsel %vm58, %v419, 0
    %v619 = vsel %vm58, %v424, 0
    %v622 = vsel %vm58, %v429, 0
    %v625 = vsel %vm58, %v434, 0
    %v628 = vsel %vm58, %v439, 0
    %v631 = vsel %vm58, %v444, 0
    %v634 = vsel %vm58, %v449, 0
    %v637 = vsel %vm58, %v454, 0
    %v640 = vsel %vm58, %v459, 0
    %v643 = vsel %vm58, %v464, 0
    %v646 = vsel %vm58, %v469, 0
    %648 = vmatprep.subr.mxu0 0.0
    %649 = vmatpush1.xpose.msra.mxu0 %v601
    %650 = vmatprep.subr.mxu0 0.0
    %651 = vmatpush1.xpose.msra.mxu0 %v604
    %652 = vmatprep.subr.mxu0 0.0
    %653 = vmatpush1.xpose.msra.mxu0 %v607
    %654 = vmatprep.subr.mxu0 0.0
    %655 = vmatpush1.xpose.msra.mxu0 %v610
    %656 = vmatprep.subr.mxu0 0.0
    %657 = vmatpush1.xpose.msra.mxu0 %v613
    %658 = vmatprep.subr.mxu0 0.0
    %659 = vmatpush1.xpose.msra.mxu0 %v616
    %660 = vmatprep.subr.mxu0 0.0
    %661 = vmatpush1.xpose.msra.mxu0 %v619
    %662 = vmatprep.subr.mxu0 0.0
    %663 = vmatpush1.xpose.msra.mxu0 %v622
    %664 = vmatprep.subr.mxu0 0.0
    %665 = vmatpush1.xpose.msra.mxu0 %v625
    %666 = vmatprep.subr.mxu0 0.0
    %667 = vmatpush1.xpose.msra.mxu0 %v628
    %668 = vmatprep.subr.mxu0 0.0
    %669 = vmatpush1.xpose.msra.mxu0 %v631
    %670 = vmatprep.subr.mxu0 0.0
    %671 = vmatpush1.xpose.msra.mxu0 %v634
    %672 = vmatprep.subr.mxu0 0.0
    %673 = vmatpush1.xpose.msra.mxu0 %v637
    %674 = vmatprep.subr.mxu0 0.0
    %675 = vmatpush1.xpose.msra.mxu0 %v640
    %676 = vmatprep.subr.mxu0 0.0
    %677 = vmatpush1.xpose.msra.mxu0 %v643
    %678 = vmatprep.subr.mxu0 0.0
    %679 = vmatpush1.xpose.msra.mxu0 %v646
    %680 = vmatprep.subr.mxu0 0.0
    %681 = vmatpush1.xpose.msra.mxu0 0.0
    %682 = vmatprep.subr.mxu0 0.0
    %683 = vmatpush1.xpose.msra.mxu0 0.0
    %684 = vmatprep.subr.mxu0 0.0
    %685 = vmatpush1.xpose.msra.mxu0 0.0
    %686 = vmatprep.subr.mxu0 0.0
    %687 = vmatpush1.xpose.msra.mxu0 0.0
    %688 = vmatprep.subr.mxu0 0.0
    %689 = vmatpush1.xpose.msra.mxu0 0.0
    %690 = vmatprep.subr.mxu0 0.0
    %691 = vmatpush1.xpose.msra.mxu0 0.0
    %692 = vmatprep.subr.mxu0 0.0
    %693 = vmatpush1.xpose.msra.mxu0 0.0
    %694 = vmatprep.subr.mxu0 0.0
    %695 = vmatpush1.xpose.msra.mxu0 0.0
    %696 = vmatprep.subr.mxu0 0.0
    %697 = vmatpush1.xpose.msra.mxu0 0.0
    %698 = vmatprep.subr.mxu0 0.0
    %699 = vmatpush1.xpose.msra.mxu0 0.0
    %700 = vmatprep.subr.mxu0 0.0
    %701 = vmatpush1.xpose.msra.mxu0 0.0
    %702 = vmatprep.subr.mxu0 0.0
    %703 = vmatpush1.xpose.msra.mxu0 0.0
    %704 = vmatprep.subr.mxu0 0.0
    %705 = vmatpush1.xpose.msra.mxu0 0.0
    %706 = vmatprep.subr.mxu0 0.0
    %707 = vmatpush1.xpose.msra.mxu0 0.0
    %708 = vmatprep.subr.mxu0 0.0
    %709 = vmatpush1.xpose.msra.mxu0 0.0
    %710 = vmatprep.subr.mxu0 0.0
    %711 = vmatpush1.xpose.msra.mxu0 0.0
    %712 = vmatprep.mubr.f32.mxu0 0.0
    %713 = vmatmul.mubr.f32.gmra.mrb[0].mxu0 %v595
    %v714 = vpop.f32.mrb[0].mxu0
    %v715 = vadd.f32 %v472, %v714
    %v716 = vpop.f32.mrb[0].mxu0
    %717 = vmatprep.mubr.f32.mxu0 0.0
    %718 = vmatmul.mubr.f32.gmra.mrb[0].mxu0 %v598
    %v719 = vpop.f32.mrb[0].mxu0
    %v720 = vadd.f32 %v473, %v719
    %v721 = vpop.f32.mrb[0].mxu0
    %722 = vdwg.mxu0
    %v723 = vmax.f32 %v715, %v720
    %v724 = vrot.slane %v723, 4
    %v725 = vmax.f32 %v723, %v724
    %v726 = vrot.slane %v725, 2
    %v727 = vmax.f32 %v725, %v726
    %v728 = vrot.slane %v727, 1
    %v729 = vmax.f32 %v727, %v728
    %v730 = vsub.f32 %v715, %v729
    %v731 = vsub.f32 %v720, %v729
    %v732 = vmul.f32 %v730, 1.442695
    %v733 = vpow.pop %v732
    %v734 = vmul.f32 %v731, 1.442695
    %v735 = vpow.pop %v734
    %v736 = vadd.f32 %v733, %v735
    %v737 = vrot.slane %v736, 4
    %v738 = vadd.f32 %v736, %v737
    %v739 = vrot.slane %v738, 2
    %v740 = vadd.f32 %v738, %v739
    %v741 = vrot.slane %v740, 1
    %v742 = vadd.f32 %v740, %v741
    %v743 = vrcp.pop %v742
    %v744 = vmul.f32 %v733, %v743
    %v745 = vmul.f32 %v735, %v743
    %746 = vst [vmem:[#allocation4] sm:$0xff] %v744
    %747 = vst [vmem:[#allocation4 + $0x8] sm:$0xff] %v745
    %748 = vadd.xlane.f32.xlu0 %v744
    %v749 = vpop.xlane.xlu0 %748
    %750 = vadd.xlane.f32.xlu0 %v745
    %v751 = vpop.xlane.xlu0 %750
    %v752 = vadd.f32 %v749, 1e-08
    %v753 = vadd.f32 %v751, 1e-08
    %v754 = vrcp.pop %v752
    %v755 = vrcp.pop %v753
    %v756 = vmul.f32 %v752, %v754
    %v757 = vmul.f32 %v753, %v755
    %v758 = vsub.f32 2.0, %v756
    %v759 = vsub.f32 2.0, %v757
    %v760 = vmul.f32 %v754, %v758
    %v761 = vmul.f32 %v755, %v759
    %v762 = vmul.f32 %v744, %v760
    %v763 = vmul.f32 %v745, %v761
    %764 = vrot.lane.b32.xlu0 %v394, 96
    %v765 = vpop.permute.xlu0 %764
    %766 = vrot.lane.b32.xlu0 %v399, 96
    %v767 = vpop.permute.xlu0 %766
    %768 = vrot.lane.b32.xlu0 %v404, 96
    %v769 = vpop.permute.xlu0 %768
    %770 = vrot.lane.b32.xlu0 %v409, 96
    %v771 = vpop.permute.xlu0 %770
    %772 = vrot.lane.b32.xlu0 %v414, 96
    %v773 = vpop.permute.xlu0 %772
    %774 = vrot.lane.b32.xlu0 %v419, 96
    %v775 = vpop.permute.xlu0 %774
    %776 = vrot.lane.b32.xlu0 %v424, 96
    %v777 = vpop.permute.xlu0 %776
    %778 = vrot.lane.b32.xlu0 %v429, 96
    %v779 = vpop.permute.xlu0 %778
    %780 = vrot.lane.b32.xlu0 %v434, 96
    %v781 = vpop.permute.xlu0 %780
    %782 = vrot.lane.b32.xlu0 %v439, 96
    %v783 = vpop.permute.xlu0 %782
    %784 = vrot.lane.b32.xlu0 %v444, 96
    %v785 = vpop.permute.xlu0 %784
    %786 = vrot.lane.b32.xlu0 %v449, 96
    %v787 = vpop.permute.xlu0 %786
    %788 = vrot.lane.b32.xlu0 %v454, 96
    %v789 = vpop.permute.xlu0 %788
    %790 = vrot.lane.b32.xlu0 %v459, 96
    %v791 = vpop.permute.xlu0 %790
    %792 = vrot.lane.b32.xlu0 %v464, 96
    %v793 = vpop.permute.xlu0 %792
    %794 = vrot.lane.b32.xlu0 %v469, 96
    %v795 = vpop.permute.xlu0 %794
    %812 = vmatprep.subr.mxu0 0.0
    %813 = vmatpush1.msra.mxu0 %v765
    %814 = vmatprep.subr.mxu0 0.0
    %815 = vmatpush1.msra.mxu0 %v767
    %816 = vmatprep.subr.mxu0 0.0
    %817 = vmatpush1.msra.mxu0 %v769
    %818 = vmatprep.subr.mxu0 0.0
    %819 = vmatpush1.msra.mxu0 %v771
    %820 = vmatprep.subr.mxu0 0.0
    %821 = vmatpush1.msra.mxu0 %v773
    %822 = vmatprep.subr.mxu0 0.0
    %823 = vmatpush1.msra.mxu0 %v775
    %824 = vmatprep.subr.mxu0 0.0
    %825 = vmatpush1.msra.mxu0 %v777
    %826 = vmatprep.subr.mxu0 0.0
    %827 = vmatpush1.msra.mxu0 %v779
    %828 = vmatprep.subr.mxu0 0.0
    %829 = vmatpush1.msra.mxu0 %v781
    %830 = vmatprep.subr.mxu0 0.0
    %831 = vmatpush1.msra.mxu0 %v783
    %832 = vmatprep.subr.mxu0 0.0
    %833 = vmatpush1.msra.mxu0 %v785
    %834 = vmatprep.subr.mxu0 0.0
    %835 = vmatpush1.msra.mxu0 %v787
    %836 = vmatprep.subr.mxu0 0.0
    %837 = vmatpush1.msra.mxu0 %v789
    %838 = vmatprep.subr.mxu0 0.0
    %839 = vmatpush1.msra.mxu0 %v791
    %840 = vmatprep.subr.mxu0 0.0
    %841 = vmatpush1.msra.mxu0 %v793
    %842 = vmatprep.subr.mxu0 0.0
    %843 = vmatpush1.msra.mxu0 %v795
    %844 = vmatprep.subr.mxu0 0.0
    %845 = vmatpush1.msra.mxu0 0.0
    %846 = vmatprep.subr.mxu0 0.0
    %847 = vmatpush1.msra.mxu0 0.0
    %848 = vmatprep.subr.mxu0 0.0
    %849 = vmatpush1.msra.mxu0 0.0
    %850 = vmatprep.subr.mxu0 0.0
    %851 = vmatpush1.msra.mxu0 0.0
    %852 = vmatprep.subr.mxu0 0.0
    %853 = vmatpush1.msra.mxu0 0.0
    %854 = vmatprep.subr.mxu0 0.0
    %855 = vmatpush1.msra.mxu0 0.0
    %856 = vmatprep.subr.mxu0 0.0
    %857 = vmatpush1.msra.mxu0 0.0
    %858 = vmatprep.subr.mxu0 0.0
    %859 = vmatpush1.msra.mxu0 0.0
    %860 = vmatprep.subr.mxu0 0.0
    %861 = vmatpush1.msra.mxu0 0.0
    %862 = vmatprep.subr.mxu0 0.0
    %863 = vmatpush1.msra.mxu0 0.0
    %864 = vmatprep.subr.mxu0 0.0
    %865 = vmatpush1.msra.mxu0 0.0
    %866 = vmatprep.subr.mxu0 0.0
    %867 = vmatpush1.msra.mxu0 0.0
    %868 = vmatprep.subr.mxu0 0.0
    %869 = vmatpush1.msra.mxu0 0.0
    %870 = vmatprep.subr.mxu0 0.0
    %871 = vmatpush1.msra.mxu0 0.0
    %872 = vmatprep.subr.mxu0 0.0
    %873 = vmatpush1.msra.mxu0 0.0
    %874 = vmatprep.subr.mxu0 0.0
    %875 = vmatpush1.msra.mxu0 0.0
    %876 = vmatprep.mubr.f32.mxu0 0.0
    %877 = vmatmul.mubr.f32.gmra.mrb[0].mxu0 %v762
    %v878 = vpop.f32.mrb[0].mxu0
    %v879 = vadd.f32 0.0, %v878
    %v880 = vpop.f32.mrb[0].mxu0
    %881 = vmatprep.mubr.f32.mxu0 0.0
    %882 = vmatmul.mubr.f32.gmra.mrb[0].mxu0 %v763
    %v883 = vpop.f32.mrb[0].mxu0
    %v884 = vadd.f32 0.0, %v883
    %v885 = vpop.f32.mrb[0].mxu0
    %886 = vdwg.mxu0
    %v887 = vld [vmem:[%s7] sm:$0xff]
    %v888 = vld [vmem:[%s7 + $0x8] sm:$0xff]
    %v889 = vld [vmem:[%s7 + $0x10] sm:$0xff]
    %v890 = vld [vmem:[%s7 + $0x18] sm:$0xff]
    %v891 = vld [vmem:[%s9] sm:$0x1]
    %v893 = vlaneseq
    %v894 = vshrl.u32 %v893, 7
    %v895 = vsub.s32 0, %v894
    %v896 = vrot.slane %v891, %v895
    %v899 = vsel %vm58, %v879, 0
    %v902 = vsel %vm58, %v884, 0
    %904 = vmatprep.subr.mxu0 0.0
    %905 = vmatpush1.msra.mxu0 %v887
    %906 = vmatprep.subr.mxu0 0.0
    %907 = vmatpush1.msra.mxu0 %v888
    %908 = vmatprep.subr.mxu0 0.0
    %909 = vmatpush1.msra.mxu0 %v889
    %910 = vmatprep.subr.mxu0 0.0
    %911 = vmatpush1.msra.mxu0 %v890
    %912 = vmatprep.subr.mxu0 0.0
    %913 = vmatpush1.msra.mxu0 0.0
    %914 = vmatprep.subr.mxu0 0.0
    %915 = vmatpush1.msra.mxu0 0.0
    %916 = vmatprep.subr.mxu0 0.0
    %917 = vmatpush1.msra.mxu0 0.0
    %918 = vmatprep.subr.mxu0 0.0
    %919 = vmatpush1.msra.mxu0 0.0
    %920 = vmatprep.subr.mxu0 0.0
    %921 = vmatpush1.msra.mxu0 0.0
    %922 = vmatprep.subr.mxu0 0.0
    %923 = vmatpush1.msra.mxu0 0.0
    %924 = vmatprep.subr.mxu0 0.0
    %925 = vmatpush1.msra.mxu0 0.0
    %926 = vmatprep.subr.mxu0 0.0
    %927 = vmatpush1.msra.mxu0 0.0
    %928 = vmatprep.subr.mxu0 0.0
    %929 = vmatpush1.msra.mxu0 0.0
    %930 = vmatprep.subr.mxu0 0.0
    %931 = vmatpush1.msra.mxu0 0.0
    %932 = vmatprep.subr.mxu0 0.0
    %933 = vmatpush1.msra.mxu0 0.0
    %934 = vmatprep.subr.mxu0 0.0
    %935 = vmatpush1.msra.mxu0 0.0
    %936 = vmatprep.subr.mxu0 0.0
    %937 = vmatpush1.msra.mxu0 0.0
    %938 = vmatprep.subr.mxu0 0.0
    %939 = vmatpush1.msra.mxu0 0.0
    %940 = vmatprep.subr.mxu0 0.0
    %941 = vmatpush1.msra.mxu0 0.0
    %942 = vmatprep.subr.mxu0 0.0
    %943 = vmatpush1.msra.mxu0 0.0
    %944 = vmatprep.subr.mxu0 0.0
    %945 = vmatpush1.msra.mxu0 0.0
    %946 = vmatprep.subr.mxu0 0.0
    %947 = vmatpush1.msra.mxu0 0.0
    %948 = vmatprep.subr.mxu0 0.0
    %949 = vmatpush1.msra.mxu0 0.0
    %950 = vmatprep.subr.mxu0 0.0
    %951 = vmatpush1.msra.mxu0 0.0
    %952 = vmatprep.subr.mxu0 0.0
    %953 = vmatpush1.msra.mxu0 0.0
    %954 = vmatprep.subr.mxu0 0.0
    %955 = vmatpush1.msra.mxu0 0.0
    %956 = vmatprep.subr.mxu0 0.0
    %957 = vmatpush1.msra.mxu0 0.0
    %958 = vmatprep.subr.mxu0 0.0
    %959 = vmatpush1.msra.mxu0 0.0
    %960 = vmatprep.subr.mxu0 0.0
    %961 = vmatpush1.msra.mxu0 0.0
    %962 = vmatprep.subr.mxu0 0.0
    %963 = vmatpush1.msra.mxu0 0.0
    %964 = vmatprep.subr.mxu0 0.0
    %965 = vmatpush1.msra.mxu0 0.0
    %966 = vmatprep.subr.mxu0 0.0
    %967 = vmatpush1.msra.mxu0 0.0
    %968 = vmatprep.mubr.f32.mxu0 0.0
    %969 = vmatmul.mubr.f32.gmra.mrb[0].mxu0 %v899
    %v970 = vpop.f32.mrb[0].mxu0
    %v971 = vadd.f32 %v896, %v970
    %v972 = vpop.f32.mrb[0].mxu0
    %973 = vmatprep.mubr.f32.mxu0 0.0
    %974 = vmatmul.mubr.f32.gmra.mrb[0].mxu0 %v902
    %v975 = vpop.f32.mrb[0].mxu0
    %v976 = vadd.f32 %v896, %v975
    %v977 = vpop.f32.mrb[0].mxu0
    %978 = vdwg.mxu0
    %v979 = vld [vmem:[%s8] sm:$0xff]
    %v980 = vld [vmem:[%s8 + $0x8] sm:$0xff]
    %v981 = vld [vmem:[%s8 + $0x10] sm:$0xff]
    %v982 = vld [vmem:[%s8 + $0x18] sm:$0xff]
    %v983 = vld [vmem:[%s10] sm:$0x1]
    %v985 = vlaneseq
    %v986 = vshrl.u32 %v985, 7
    %v987 = vsub.s32 0, %v986
    %v988 = vrot.slane %v983, %v987
    %v991 = vsel %vm58, %v474, 0
    %v994 = vsel %vm58, %v475, 0
    %996 = vmatprep.subr.mxu0 0.0
    %997 = vmatpush1.msra.mxu0 %v979
    %998 = vmatprep.subr.mxu0 0.0
    %999 = vmatpush1.msra.mxu0 %v980
    %1000 = vmatprep.subr.mxu0 0.0
    %1001 = vmatpush1.msra.mxu0 %v981
    %1002 = vmatprep.subr.mxu0 0.0
    %1003 = vmatpush1.msra.mxu0 %v982
    %1004 = vmatprep.subr.mxu0 0.0
    %1005 = vmatpush1.msra.mxu0 0.0
    %1006 = vmatprep.subr.mxu0 0.0
    %1007 = vmatpush1.msra.mxu0 0.0
    %1008 = vmatprep.subr.mxu0 0.0
    %1009 = vmatpush1.msra.mxu0 0.0
    %1010 = vmatprep.subr.mxu0 0.0
    %1011 = vmatpush1.msra.mxu0 0.0
    %1012 = vmatprep.subr.mxu0 0.0
    %1013 = vmatpush1.msra.mxu0 0.0
    %1014 = vmatprep.subr.mxu0 0.0
    %1015 = vmatpush1.msra.mxu0 0.0
    %1016 = vmatprep.subr.mxu0 0.0
    %1017 = vmatpush1.msra.mxu0 0.0
    %1018 = vmatprep.subr.mxu0 0.0
    %1019 = vmatpush1.msra.mxu0 0.0
    %1020 = vmatprep.subr.mxu0 0.0
    %1021 = vmatpush1.msra.mxu0 0.0
    %1022 = vmatprep.subr.mxu0 0.0
    %1023 = vmatpush1.msra.mxu0 0.0
    %1024 = vmatprep.subr.mxu0 0.0
    %1025 = vmatpush1.msra.mxu0 0.0
    %1026 = vmatprep.subr.mxu0 0.0
    %1027 = vmatpush1.msra.mxu0 0.0
    %1028 = vmatprep.subr.mxu0 0.0
    %1029 = vmatpush1.msra.mxu0 0.0
    %1030 = vmatprep.subr.mxu0 0.0
    %1031 = vmatpush1.msra.mxu0 0.0
    %1032 = vmatprep.subr.mxu0 0.0
    %1033 = vmatpush1.msra.mxu0 0.0
    %1034 = vmatprep.subr.mxu0 0.0
    %1035 = vmatpush1.msra.mxu0 0.0
    %1036 = vmatprep.subr.mxu0 0.0
    %1037 = vmatpush1.msra.mxu0 0.0
    %1038 = vmatprep.subr.mxu0 0.0
    %1039 = vmatpush1.msra.mxu0 0.0
    %1040 = vmatprep.subr.mxu0 0.0
    %1041 = vmatpush1.msra.mxu0 0.0
    %1042 = vmatprep.subr.mxu0 0.0
    %1043 = vmatpush1.msra.mxu0 0.0
    %1044 = vmatprep.subr.mxu0 0.0
    %1045 = vmatpush1.msra.mxu0 0.0
    %1046 = vmatprep.subr.mxu0 0.0
    %1047 = vmatpush1.msra.mxu0 0.0
    %1048 = vmatprep.subr.mxu0 0.0
    %1049 = vmatpush1.msra.mxu0 0.0
    %1050 = vmatprep.subr.mxu0 0.0
    %1051 = vmatpush1.msra.mxu0 0.0
    %1052 = vmatprep.subr.mxu0 0.0
    %1053 = vmatpush1.msra.mxu0 0.0
    %1054 = vmatprep.subr.mxu0 0.0
    %1055 = vmatpush1.msra.mxu0 0.0
    %1056 = vmatprep.subr.mxu0 0.0
    %1057 = vmatpush1.msra.mxu0 0.0
    %1058 = vmatprep.subr.mxu0 0.0
    %1059 = vmatpush1.msra.mxu0 0.0
    %1060 = vmatprep.mubr.f32.mxu0 0.0
    %1061 = vmatmul.mubr.f32.gmra.mrb[0].mxu0 %v991
    %v1062 = vpop.f32.mrb[0].mxu0
    %v1063 = vadd.f32 %v988, %v1062
    %v1064 = vpop.f32.mrb[0].mxu0
    %1065 = vmatprep.mubr.f32.mxu0 0.0
    %1066 = vmatmul.mubr.f32.gmra.mrb[0].mxu0 %v994
    %v1067 = vpop.f32.mrb[0].mxu0
    %v1068 = vadd.f32 %v988, %v1067
    %v1069 = vpop.f32.mrb[0].mxu0
    %1070 = vdwg.mxu0
    %v1071 = vadd.f32 %v971, %v1063
    %v1072 = vadd.f32 %v976, %v1068
    %v1073 = vxor.u32 %v1071, 2147483648
    %v1074 = vxor.u32 %v1072, 2147483648
    %v1075 = vmul.f32 %v1073, 1.442695
    %v1076 = vpow.pop %v1075
    %v1077 = vmul.f32 %v1074, 1.442695
    %v1078 = vpow.pop %v1077
    %v1079 = vadd.f32 %v1076, 1.0
    %v1080 = vadd.f32 %v1078, 1.0
    %v1081 = vrcp.pop %v1079
    %v1082 = vmul.f32 1.0, %v1081
    %v1083 = vrcp.pop %v1080
    %v1084 = vmul.f32 1.0, %v1083
    %1087 = vrot.lane.b32.xlu0 %v1063, 64
    %v1088 = vpop.permute.xlu0 %1087
    %1089 = vrot.lane.b32.xlu0 %v1068, 64
    %v1090 = vpop.permute.xlu0 %1089
    %v1093 = vmul.f32 %v1082, %v1088
    %v1094 = vmul.f32 %v1084, %v1090
    %1097 = vrot.lane.b32.xlu0 %v1093, 64
    %v1098 = vpop.permute.xlu0 %1097
    %1099 = vrot.lane.b32.xlu0 %v1094, 64
    %v1100 = vpop.permute.xlu0 %1099
    %v1103 = vadd.f32 %v971, %v1098
    %v1104 = vadd.f32 %v976, %v1100
    %v1105 = vtanh.pop %v1103
    %v1106 = vtanh.pop %v1104
    %v1107 = vsub.f32 1.0, %v1082
    %v1108 = vsub.f32 1.0, %v1084
    %1111 = vrot.lane.b32.xlu0 %v1105, 96
    %v1112 = vpop.permute.xlu0 %1111
    %1113 = vrot.lane.b32.xlu0 %v1106, 96
    %v1114 = vpop.permute.xlu0 %1113
    %v1117 = vmul.f32 %v1107, %v1112
    %v1118 = vmul.f32 %v1108, %v1114
    %1119 = vrot.lane.b32.xlu0 %v474, 32
    %v1120 = vpop.permute.xlu0 %1119
    %1121 = vrot.lane.b32.xlu0 %v475, 32
    %v1122 = vpop.permute.xlu0 %1121
    %v1125 = vmul.f32 %v1082, %v1120
    %v1126 = vmul.f32 %v1084, %v1122
    %v1127 = vadd.f32 %v1117, %v1125
    %v1128 = vadd.f32 %v1118, %v1126
    %1131 = vrot.lane.b32.xlu0 %v1127, 96
    %v1132 = vpop.permute.xlu0 %1131
    %1133 = vrot.lane.b32.xlu0 %v1128, 96
    %v1134 = vpop.permute.xlu0 %1133
    %v1137 = vsel %vm58, %v1132, 0.0
    %1138 = vadd.xlane.f32.xlu0 %v1137
    %v1139 = vpop.xlane.xlu0 %1138
    %v1140 = vsel %vm58, %v1134, 0.0
    %1141 = vadd.xlane.f32.xlu0 %v1140
    %v1142 = vpop.xlane.xlu0 %1141
    %v1143 = vmul.f32 %v1139, %v107
    %v1144 = vmul.f32 %v1142, %v107
    %v1145 = vsub.f32 %v1127, %v1143
    %v1146 = vsub.f32 %v1128, %v1144
    %v1147 = vmul.f32 %v1145, %v1145
    %v1148 = vmul.f32 %v1146, %v1146
    %1151 = vrot.lane.b32.xlu0 %v1147, 96
    %v1152 = vpop.permute.xlu0 %1151
    %1153 = vrot.lane.b32.xlu0 %v1148, 96
    %v1154 = vpop.permute.xlu0 %1153
    %v1157 = vsel %vm58, %v1152, 0.0
    %1158 = vadd.xlane.f32.xlu0 %v1157
    %v1159 = vpop.xlane.xlu0 %1158
    %v1160 = vsel %vm58, %v1154, 0.0
    %1161 = vadd.xlane.f32.xlu0 %v1160
    %v1162 = vpop.xlane.xlu0 %1161
    %v1163 = vmul.f32 %v1159, %v107
    %v1164 = vmul.f32 %v1162, %v107
    %v1165 = vadd.f32 %v1163, 1e-05
    %v1166 = vadd.f32 %v1164, 1e-05
    %v1167 = vrsqrt.pop %v1165
    %v1168 = vrsqrt.pop %v1166
    %v1169 = vmul.f32 %v1145, %v1167
    %v1170 = vmul.f32 %v1146, %v1168
    %v1171 = vld [vmem:[%s5] sm:$0xff]
    %v1172 = vld [vmem:[%s5 + $0x8] sm:$0xff]
    %v1173 = vld [vmem:[%s5 + $0x10] sm:$0xff]
    %v1174 = vld [vmem:[%s5 + $0x18] sm:$0xff]
    %v1175 = vld [vmem:[%s6] sm:$0x1]
    %v1177 = vlaneseq
    %v1178 = vshrl.u32 %v1177, 7
    %v1179 = vsub.s32 0, %v1178
    %v1180 = vrot.slane %v1175, %v1179
    %1184 = vrot.lane.b32.xlu0 %v1169, 96
    %v1185 = vpop.permute.xlu0 %1184
    %1186 = vrot.lane.b32.xlu0 %v1170, 96
    %v1187 = vpop.permute.xlu0 %1186
    %v1188 = vsel %vm58, %v1185, 0
    %v1190 = vsel %vm58, %v1187, 0
    %1192 = vmatprep.subr.mxu0 0.0
    %1193 = vmatpush1.msra.mxu0 %v1171
    %1194 = vmatprep.subr.mxu0 0.0
    %1195 = vmatpush1.msra.mxu0 %v1172
    %1196 = vmatprep.subr.mxu0 0.0
    %1197 = vmatpush1.msra.mxu0 %v1173
    %1198 = vmatprep.subr.mxu0 0.0
    %1199 = vmatpush1.msra.mxu0 %v1174
    %1200 = vmatprep.subr.mxu0 0.0
    %1201 = vmatpush1.msra.mxu0 0.0
    %1202 = vmatprep.subr.mxu0 0.0
    %1203 = vmatpush1.msra.mxu0 0.0
    %1204 = vmatprep.subr.mxu0 0.0
    %1205 = vmatpush1.msra.mxu0 0.0
    %1206 = vmatprep.subr.mxu0 0.0
    %1207 = vmatpush1.msra.mxu0 0.0
    %1208 = vmatprep.subr.mxu0 0.0
    %1209 = vmatpush1.msra.mxu0 0.0
    %1210 = vmatprep.subr.mxu0 0.0
    %1211 = vmatpush1.msra.mxu0 0.0
    %1212 = vmatprep.subr.mxu0 0.0
    %1213 = vmatpush1.msra.mxu0 0.0
    %1214 = vmatprep.subr.mxu0 0.0
    %1215 = vmatpush1.msra.mxu0 0.0
    %1216 = vmatprep.subr.mxu0 0.0
    %1217 = vmatpush1.msra.mxu0 0.0
    %1218 = vmatprep.subr.mxu0 0.0
    %1219 = vmatpush1.msra.mxu0 0.0
    %1220 = vmatprep.subr.mxu0 0.0
    %1221 = vmatpush1.msra.mxu0 0.0
    %1222 = vmatprep.subr.mxu0 0.0
    %1223 = vmatpush1.msra.mxu0 0.0
    %1224 = vmatprep.subr.mxu0 0.0
    %1225 = vmatpush1.msra.mxu0 0.0
    %1226 = vmatprep.subr.mxu0 0.0
    %1227 = vmatpush1.msra.mxu0 0.0
    %1228 = vmatprep.subr.mxu0 0.0
    %1229 = vmatpush1.msra.mxu0 0.0
    %1230 = vmatprep.subr.mxu0 0.0
    %1231 = vmatpush1.msra.mxu0 0.0
    %1232 = vmatprep.subr.mxu0 0.0
    %1233 = vmatpush1.msra.mxu0 0.0
    %1234 = vmatprep.subr.mxu0 0.0
    %1235 = vmatpush1.msra.mxu0 0.0
    %1236 = vmatprep.subr.mxu0 0.0
    %1237 = vmatpush1.msra.mxu0 0.0
    %1238 = vmatprep.subr.mxu0 0.0
    %1239 = vmatpush1.msra.mxu0 0.0
    %1240 = vmatprep.subr.mxu0 0.0
    %1241 = vmatpush1.msra.mxu0 0.0
    %1242 = vmatprep.subr.mxu0 0.0
    %1243 = vmatpush1.msra.mxu0 0.0
    %1244 = vmatprep.subr.mxu0 0.0
    %1245 = vmatpush1.msra.mxu0 0.0
    %1246 = vmatprep.subr.mxu0 0.0
    %1247 = vmatpush1.msra.mxu0 0.0
    %1248 = vmatprep.subr.mxu0 0.0
    %1249 = vmatpush1.msra.mxu0 0.0
    %1250 = vmatprep.subr.mxu0 0.0
    %1251 = vmatpush1.msra.mxu0 0.0
    %1252 = vmatprep.subr.mxu0 0.0
    %1253 = vmatpush1.msra.mxu0 0.0
    %1254 = vmatprep.subr.mxu0 0.0
    %1255 = vmatpush1.msra.mxu0 0.0
    %1256 = vmatprep.mubr.f32.mxu0 0.0
    %1257 = vmatmul.mubr.f32.gmra.mrb[0].mxu0 %v1188
    %v1258 = vpop.f32.mrb[0].mxu0
    %v1259 = vadd.f32 %v1180, %v1258
    %v1260 = vpop.f32.mrb[0].mxu0
    %1261 = vmatprep.mubr.f32.mxu0 0.0
    %1262 = vmatmul.mubr.f32.gmra.mrb[0].mxu0 %v1190
    %v1263 = vpop.f32.mrb[0].mxu0
    %v1264 = vadd.f32 %v1180, %v1263
    %v1265 = vpop.f32.mrb[0].mxu0
    %1266 = vdwg.mxu0
    %v1268 = vsel %vm58, %v1259, 0
    %v1271 = vsel %vm58, %v1264, 0
    %1273 = vmatprep.subr.mxu0 0.0
    %1274 = vmatpush1.xpose.msra.mxu0 %v601
    %1275 = vmatprep.subr.mxu0 0.0
    %1276 = vmatpush1.xpose.msra.mxu0 %v604
    %1277 = vmatprep.subr.mxu0 0.0
    %1278 = vmatpush1.xpose.msra.mxu0 %v607
    %1279 = vmatprep.subr.mxu0 0.0
    %1280 = vmatpush1.xpose.msra.mxu0 %v610
    %1281 = vmatprep.subr.mxu0 0.0
    %1282 = vmatpush1.xpose.msra.mxu0 %v613
    %1283 = vmatprep.subr.mxu0 0.0
    %1284 = vmatpush1.xpose.msra.mxu0 %v616
    %1285 = vmatprep.subr.mxu0 0.0
    %1286 = vmatpush1.xpose.msra.mxu0 %v619
    %1287 = vmatprep.subr.mxu0 0.0
    %1288 = vmatpush1.xpose.msra.mxu0 %v622
    %1289 = vmatprep.subr.mxu0 0.0
    %1290 = vmatpush1.xpose.msra.mxu0 %v625
    %1291 = vmatprep.subr.mxu0 0.0
    %1292 = vmatpush1.xpose.msra.mxu0 %v628
    %1293 = vmatprep.subr.mxu0 0.0
    %1294 = vmatpush1.xpose.msra.mxu0 %v631
    %1295 = vmatprep.subr.mxu0 0.0
    %1296 = vmatpush1.xpose.msra.mxu0 %v634
    %1297 = vmatprep.subr.mxu0 0.0
    %1298 = vmatpush1.xpose.msra.mxu0 %v637
    %1299 = vmatprep.subr.mxu0 0.0
    %1300 = vmatpush1.xpose.msra.mxu0 %v640
    %1301 = vmatprep.subr.mxu0 0.0
    %1302 = vmatpush1.xpose.msra.mxu0 %v643
    %1303 = vmatprep.subr.mxu0 0.0
    %1304 = vmatpush1.xpose.msra.mxu0 %v646
    %1305 = vmatprep.subr.mxu0 0.0
    %1306 = vmatpush1.xpose.msra.mxu0 0.0
    %1307 = vmatprep.subr.mxu0 0.0
    %1308 = vmatpush1.xpose.msra.mxu0 0.0
    %1309 = vmatprep.subr.mxu0 0.0
    %1310 = vmatpush1.xpose.msra.mxu0 0.0
    %1311 = vmatprep.subr.mxu0 0.0
    %1312 = vmatpush1.xpose.msra.mxu0 0.0
    %1313 = vmatprep.subr.mxu0 0.0
    %1314 = vmatpush1.xpose.msra.mxu0 0.0
    %1315 = vmatprep.subr.mxu0 0.0
    %1316 = vmatpush1.xpose.msra.mxu0 0.0
    %1317 = vmatprep.subr.mxu0 0.0
    %1318 = vmatpush1.xpose.msra.mxu0 0.0
    %1319 = vmatprep.subr.mxu0 0.0
    %1320 = vmatpush1.xpose.msra.mxu0 0.0
    %1321 = vmatprep.subr.mxu0 0.0
    %1322 = vmatpush1.xpose.msra.mxu0 0.0
    %1323 = vmatprep.subr.mxu0 0.0
    %1324 = vmatpush1.xpose.msra.mxu0 0.0
    %1325 = vmatprep.subr.mxu0 0.0
    %1326 = vmatpush1.xpose.msra.mxu0 0.0
    %1327 = vmatprep.subr.mxu0 0.0
    %1328 = vmatpush1.xpose.msra.mxu0 0.0
    %1329 = vmatprep.subr.mxu0 0.0
    %1330 = vmatpush1.xpose.msra.mxu0 0.0
    %1331 = vmatprep.subr.mxu0 0.0
    %1332 = vmatpush1.xpose.msra.mxu0 0.0
    %1333 = vmatprep.subr.mxu0 0.0
    %1334 = vmatpush1.xpose.msra.mxu0 0.0
    %1335 = vmatprep.subr.mxu0 0.0
    %1336 = vmatpush1.xpose.msra.mxu0 0.0
    %1337 = vmatprep.mubr.f32.mxu0 0.0
    %1338 = vmatmul.mubr.f32.gmra.mrb[0].mxu0 %v1268
    %v1339 = vpop.f32.mrb[0].mxu0
    %v1340 = vadd.f32 %v472, %v1339
    %v1341 = vpop.f32.mrb[0].mxu0
    %1342 = vmatprep.mubr.f32.mxu0 0.0
    %1343 = vmatmul.mubr.f32.gmra.mrb[0].mxu0 %v1271
    %v1344 = vpop.f32.mrb[0].mxu0
    %v1345 = vadd.f32 %v473, %v1344
    %v1346 = vpop.f32.mrb[0].mxu0
    %1347 = vdwg.mxu0
    %v1348 = vmax.f32 %v1340, %v1345
    %v1349 = vrot.slane %v1348, 4
    %v1350 = vmax.f32 %v1348, %v1349
    %v1351 = vrot.slane %v1350, 2
    %v1352 = vmax.f32 %v1350, %v1351
    %v1353 = vrot.slane %v1352, 1
    %v1354 = vmax.f32 %v1352, %v1353
    %v1355 = vsub.f32 %v1340, %v1354
    %v1356 = vsub.f32 %v1345, %v1354
    %v1357 = vmul.f32 %v1355, 1.442695
    %v1358 = vpow.pop %v1357
    %v1359 = vmul.f32 %v1356, 1.442695
    %v1360 = vpow.pop %v1359
    %v1361 = vadd.f32 %v1358, %v1360
    %v1362 = vrot.slane %v1361, 4
    %v1363 = vadd.f32 %v1361, %v1362
    %v1364 = vrot.slane %v1363, 2
    %v1365 = vadd.f32 %v1363, %v1364
    %v1366 = vrot.slane %v1365, 1
    %v1367 = vadd.f32 %v1365, %v1366
    %v1368 = vrcp.pop %v1367
    %v1369 = vmul.f32 %v1358, %v1368
    %v1370 = vmul.f32 %v1360, %v1368
    %s1371 = scalar_lea.vmem [#allocation4], 16
    %1372 = vst [vmem:[%s1371] sm:$0xff] %v1369
    %1373 = vst [vmem:[%s1371 + $0x8] sm:$0xff] %v1370
    %1374 = vadd.xlane.f32.xlu0 %v1369
    %v1375 = vpop.xlane.xlu0 %1374
    %1376 = vadd.xlane.f32.xlu0 %v1370
    %v1377 = vpop.xlane.xlu0 %1376
    %v1378 = vadd.f32 %v1375, 1e-08
    %v1379 = vadd.f32 %v1377, 1e-08
    %v1380 = vrcp.pop %v1378
    %v1381 = vrcp.pop %v1379
    %v1382 = vmul.f32 %v1378, %v1380
    %v1383 = vmul.f32 %v1379, %v1381
    %v1384 = vsub.f32 2.0, %v1382
    %v1385 = vsub.f32 2.0, %v1383
    %v1386 = vmul.f32 %v1380, %v1384
    %v1387 = vmul.f32 %v1381, %v1385
    %v1388 = vmul.f32 %v1369, %v1386
    %v1389 = vmul.f32 %v1370, %v1387
    %1390 = vmatprep.subr.mxu0 0.0
    %1391 = vmatpush1.msra.mxu0 %v765
    %1392 = vmatprep.subr.mxu0 0.0
    %1393 = vmatpush1.msra.mxu0 %v767
    %1394 = vmatprep.subr.mxu0 0.0
    %1395 = vmatpush1.msra.mxu0 %v769
    %1396 = vmatprep.subr.mxu0 0.0
    %1397 = vmatpush1.msra.mxu0 %v771
    %1398 = vmatprep.subr.mxu0 0.0
    %1399 = vmatpush1.msra.mxu0 %v773
    %1400 = vmatprep.subr.mxu0 0.0
    %1401 = vmatpush1.msra.mxu0 %v775
    %1402 = vmatprep.subr.mxu0 0.0
    %1403 = vmatpush1.msra.mxu0 %v777
    %1404 = vmatprep.subr.mxu0 0.0
    %1405 = vmatpush1.msra.mxu0 %v779
    %1406 = vmatprep.subr.mxu0 0.0
    %1407 = vmatpush1.msra.mxu0 %v781
    %1408 = vmatprep.subr.mxu0 0.0
    %1409 = vmatpush1.msra.mxu0 %v783
    %1410 = vmatprep.subr.mxu0 0.0
    %1411 = vmatpush1.msra.mxu0 %v785
    %1412 = vmatprep.subr.mxu0 0.0
    %1413 = vmatpush1.msra.mxu0 %v787
    %1414 = vmatprep.subr.mxu0 0.0
    %1415 = vmatpush1.msra.mxu0 %v789
    %1416 = vmatprep.subr.mxu0 0.0
    %1417 = vmatpush1.msra.mxu0 %v791
    %1418 = vmatprep.subr.mxu0 0.0
    %1419 = vmatpush1.msra.mxu0 %v793
    %1420 = vmatprep.subr.mxu0 0.0
    %1421 = vmatpush1.msra.mxu0 %v795
    %1422 = vmatprep.subr.mxu0 0.0
    %1423 = vmatpush1.msra.mxu0 0.0
    %1424 = vmatprep.subr.mxu0 0.0
    %1425 = vmatpush1.msra.mxu0 0.0
    %1426 = vmatprep.subr.mxu0 0.0
    %1427 = vmatpush1.msra.mxu0 0.0
    %1428 = vmatprep.subr.mxu0 0.0
    %1429 = vmatpush1.msra.mxu0 0.0
    %1430 = vmatprep.subr.mxu0 0.0
    %1431 = vmatpush1.msra.mxu0 0.0
    %1432 = vmatprep.subr.mxu0 0.0
    %1433 = vmatpush1.msra.mxu0 0.0
    %1434 = vmatprep.subr.mxu0 0.0
    %1435 = vmatpush1.msra.mxu0 0.0
    %1436 = vmatprep.subr.mxu0 0.0
    %1437 = vmatpush1.msra.mxu0 0.0
    %1438 = vmatprep.subr.mxu0 0.0
    %1439 = vmatpush1.msra.mxu0 0.0
    %1440 = vmatprep.subr.mxu0 0.0
    %1441 = vmatpush1.msra.mxu0 0.0
    %1442 = vmatprep.subr.mxu0 0.0
    %1443 = vmatpush1.msra.mxu0 0.0
    %1444 = vmatprep.subr.mxu0 0.0
    %1445 = vmatpush1.msra.mxu0 0.0
    %1446 = vmatprep.subr.mxu0 0.0
    %1447 = vmatpush1.msra.mxu0 0.0
    %1448 = vmatprep.subr.mxu0 0.0
    %1449 = vmatpush1.msra.mxu0 0.0
    %1450 = vmatprep.subr.mxu0 0.0
    %1451 = vmatpush1.msra.mxu0 0.0
    %1452 = vmatprep.subr.mxu0 0.0
    %1453 = vmatpush1.msra.mxu0 0.0
    %1454 = vmatprep.mubr.f32.mxu0 0.0
    %1455 = vmatmul.mubr.f32.gmra.mrb[0].mxu0 %v1388
    %v1456 = vpop.f32.mrb[0].mxu0
    %v1457 = vadd.f32 0.0, %v1456
    %v1458 = vpop.f32.mrb[0].mxu0
    %1459 = vmatprep.mubr.f32.mxu0 0.0
    %1460 = vmatmul.mubr.f32.gmra.mrb[0].mxu0 %v1389
    %v1461 = vpop.f32.mrb[0].mxu0
    %v1462 = vadd.f32 0.0, %v1461
    %v1463 = vpop.f32.mrb[0].mxu0
    %1464 = vdwg.mxu0
    %v1465 = vld [vmem:[%s7] sm:$0xff]
    %v1466 = vld [vmem:[%s7 + $0x8] sm:$0xff]
    %v1467 = vld [vmem:[%s7 + $0x10] sm:$0xff]
    %v1468 = vld [vmem:[%s7 + $0x18] sm:$0xff]
    %v1469 = vld [vmem:[%s9] sm:$0x1]
    %v1471 = vlaneseq
    %v1472 = vshrl.u32 %v1471, 7
    %v1473 = vsub.s32 0, %v1472
    %v1474 = vrot.slane %v1469, %v1473
    %v1477 = vsel %vm58, %v1457, 0
    %v1480 = vsel %vm58, %v1462, 0
    %1482 = vmatprep.subr.mxu0 0.0
    %1483 = vmatpush1.msra.mxu0 %v1465
    %1484 = vmatprep.subr.mxu0 0.0
    %1485 = vmatpush1.msra.mxu0 %v1466
    %1486 = vmatprep.subr.mxu0 0.0
    %1487 = vmatpush1.msra.mxu0 %v1467
    %1488 = vmatprep.subr.mxu0 0.0
    %1489 = vmatpush1.msra.mxu0 %v1468
    %1490 = vmatprep.subr.mxu0 0.0
    %1491 = vmatpush1.msra.mxu0 0.0
    %1492 = vmatprep.subr.mxu0 0.0
    %1493 = vmatpush1.msra.mxu0 0.0
    %1494 = vmatprep.subr.mxu0 0.0
    %1495 = vmatpush1.msra.mxu0 0.0
    %1496 = vmatprep.subr.mxu0 0.0
    %1497 = vmatpush1.msra.mxu0 0.0
    %1498 = vmatprep.subr.mxu0 0.0
    %1499 = vmatpush1.msra.mxu0 0.0
    %1500 = vmatprep.subr.mxu0 0.0
    %1501 = vmatpush1.msra.mxu0 0.0
    %1502 = vmatprep.subr.mxu0 0.0
    %1503 = vmatpush1.msra.mxu0 0.0
    %1504 = vmatprep.subr.mxu0 0.0
    %1505 = vmatpush1.msra.mxu0 0.0
    %1506 = vmatprep.subr.mxu0 0.0
    %1507 = vmatpush1.msra.mxu0 0.0
    %1508 = vmatprep.subr.mxu0 0.0
    %1509 = vmatpush1.msra.mxu0 0.0
    %1510 = vmatprep.subr.mxu0 0.0
    %1511 = vmatpush1.msra.mxu0 0.0
    %1512 = vmatprep.subr.mxu0 0.0
    %1513 = vmatpush1.msra.mxu0 0.0
    %1514 = vmatprep.subr.mxu0 0.0
    %1515 = vmatpush1.msra.mxu0 0.0
    %1516 = vmatprep.subr.mxu0 0.0
    %1517 = vmatpush1.msra.mxu0 0.0
    %1518 = vmatprep.subr.mxu0 0.0
    %1519 = vmatpush1.msra.mxu0 0.0
    %1520 = vmatprep.subr.mxu0 0.0
    %1521 = vmatpush1.msra.mxu0 0.0
    %1522 = vmatprep.subr.mxu0 0.0
    %1523 = vmatpush1.msra.mxu0 0.0
    %1524 = vmatprep.subr.mxu0 0.0
    %1525 = vmatpush1.msra.mxu0 0.0
    %1526 = vmatprep.subr.mxu0 0.0
    %1527 = vmatpush1.msra.mxu0 0.0
    %1528 = vmatprep.subr.mxu0 0.0
    %1529 = vmatpush1.msra.mxu0 0.0
    %1530 = vmatprep.subr.mxu0 0.0
    %1531 = vmatpush1.msra.mxu0 0.0
    %1532 = vmatprep.subr.mxu0 0.0
    %1533 = vmatpush1.msra.mxu0 0.0
    %1534 = vmatprep.subr.mxu0 0.0
    %1535 = vmatpush1.msra.mxu0 0.0
    %1536 = vmatprep.subr.mxu0 0.0
    %1537 = vmatpush1.msra.mxu0 0.0
    %1538 = vmatprep.subr.mxu0 0.0
    %1539 = vmatpush1.msra.mxu0 0.0
    %1540 = vmatprep.subr.mxu0 0.0
    %1541 = vmatpush1.msra.mxu0 0.0
    %1542 = vmatprep.subr.mxu0 0.0
    %1543 = vmatpush1.msra.mxu0 0.0
    %1544 = vmatprep.subr.mxu0 0.0
    %1545 = vmatpush1.msra.mxu0 0.0
    %1546 = vmatprep.mubr.f32.mxu0 0.0
    %1547 = vmatmul.mubr.f32.gmra.mrb[0].mxu0 %v1477
    %v1548 = vpop.f32.mrb[0].mxu0
    %v1549 = vadd.f32 %v1474, %v1548
    %v1550 = vpop.f32.mrb[0].mxu0
    %1551 = vmatprep.mubr.f32.mxu0 0.0
    %1552 = vmatmul.mubr.f32.gmra.mrb[0].mxu0 %v1480
    %v1553 = vpop.f32.mrb[0].mxu0
    %v1554 = vadd.f32 %v1474, %v1553
    %v1555 = vpop.f32.mrb[0].mxu0
    %1556 = vdwg.mxu0
    %v1557 = vld [vmem:[%s8] sm:$0xff]
    %v1558 = vld [vmem:[%s8 + $0x8] sm:$0xff]
    %v1559 = vld [vmem:[%s8 + $0x10] sm:$0xff]
    %v1560 = vld [vmem:[%s8 + $0x18] sm:$0xff]
    %v1561 = vld [vmem:[%s10] sm:$0x1]
    %v1563 = vlaneseq
    %v1564 = vshrl.u32 %v1563, 7
    %v1565 = vsub.s32 0, %v1564
    %v1566 = vrot.slane %v1561, %v1565
    %v1568 = vsel %vm58, %v1132, 0
    %v1570 = vsel %vm58, %v1134, 0
    %1572 = vmatprep.subr.mxu0 0.0
    %1573 = vmatpush1.msra.mxu0 %v1557
    %1574 = vmatprep.subr.mxu0 0.0
    %1575 = vmatpush1.msra.mxu0 %v1558
    %1576 = vmatprep.subr.mxu0 0.0
    %1577 = vmatpush1.msra.mxu0 %v1559
    %1578 = vmatprep.subr.mxu0 0.0
    %1579 = vmatpush1.msra.mxu0 %v1560
    %1580 = vmatprep.subr.mxu0 0.0
    %1581 = vmatpush1.msra.mxu0 0.0
    %1582 = vmatprep.subr.mxu0 0.0
    %1583 = vmatpush1.msra.mxu0 0.0
    %1584 = vmatprep.subr.mxu0 0.0
    %1585 = vmatpush1.msra.mxu0 0.0
    %1586 = vmatprep.subr.mxu0 0.0
    %1587 = vmatpush1.msra.mxu0 0.0
    %1588 = vmatprep.subr.mxu0 0.0
    %1589 = vmatpush1.msra.mxu0 0.0
    %1590 = vmatprep.subr.mxu0 0.0
    %1591 = vmatpush1.msra.mxu0 0.0
    %1592 = vmatprep.subr.mxu0 0.0
    %1593 = vmatpush1.msra.mxu0 0.0
    %1594 = vmatprep.subr.mxu0 0.0
    %1595 = vmatpush1.msra.mxu0 0.0
    %1596 = vmatprep.subr.mxu0 0.0
    %1597 = vmatpush1.msra.mxu0 0.0
    %1598 = vmatprep.subr.mxu0 0.0
    %1599 = vmatpush1.msra.mxu0 0.0
    %1600 = vmatprep.subr.mxu0 0.0
    %1601 = vmatpush1.msra.mxu0 0.0
    %1602 = vmatprep.subr.mxu0 0.0
    %1603 = vmatpush1.msra.mxu0 0.0
    %1604 = vmatprep.subr.mxu0 0.0
    %1605 = vmatpush1.msra.mxu0 0.0
    %1606 = vmatprep.subr.mxu0 0.0
    %1607 = vmatpush1.msra.mxu0 0.0
    %1608 = vmatprep.subr.mxu0 0.0
    %1609 = vmatpush1.msra.mxu0 0.0
    %1610 = vmatprep.subr.mxu0 0.0
    %1611 = vmatpush1.msra.mxu0 0.0
    %1612 = vmatprep.subr.mxu0 0.0
    %1613 = vmatpush1.msra.mxu0 0.0
    %1614 = vmatprep.subr.mxu0 0.0
    %1615 = vmatpush1.msra.mxu0 0.0
    %1616 = vmatprep.subr.mxu0 0.0
    %1617 = vmatpush1.msra.mxu0 0.0
    %1618 = vmatprep.subr.mxu0 0.0
    %1619 = vmatpush1.msra.mxu0 0.0
    %1620 = vmatprep.subr.mxu0 0.0
    %1621 = vmatpush1.msra.mxu0 0.0
    %1622 = vmatprep.subr.mxu0 0.0
    %1623 = vmatpush1.msra.mxu0 0.0
    %1624 = vmatprep.subr.mxu0 0.0
    %1625 = vmatpush1.msra.mxu0 0.0
    %1626 = vmatprep.subr.mxu0 0.0
    %1627 = vmatpush1.msra.mxu0 0.0
    %1628 = vmatprep.subr.mxu0 0.0
    %1629 = vmatpush1.msra.mxu0 0.0
    %1630 = vmatprep.subr.mxu0 0.0
    %1631 = vmatpush1.msra.mxu0 0.0
    %1632 = vmatprep.subr.mxu0 0.0
    %1633 = vmatpush1.msra.mxu0 0.0
    %1634 = vmatprep.subr.mxu0 0.0
    %1635 = vmatpush1.msra.mxu0 0.0
    %1636 = vmatprep.mubr.f32.mxu0 0.0
    %1637 = vmatmul.mubr.f32.gmra.mrb[0].mxu0 %v1568
    %v1638 = vpop.f32.mrb[0].mxu0
    %v1639 = vadd.f32 %v1566, %v1638
    %v1640 = vpop.f32.mrb[0].mxu0
    %1641 = vmatprep.mubr.f32.mxu0 0.0
    %1642 = vmatmul.mubr.f32.gmra.mrb[0].mxu0 %v1570
    %v1643 = vpop.f32.mrb[0].mxu0
    %v1644 = vadd.f32 %v1566, %v1643
    %v1645 = vpop.f32.mrb[0].mxu0
    %1646 = vdwg.mxu0
    %v1647 = vadd.f32 %v1549, %v1639
    %v1648 = vadd.f32 %v1554, %v1644
    %v1649 = vxor.u32 %v1647, 2147483648
    %v1650 = vxor.u32 %v1648, 2147483648
    %v1651 = vmul.f32 %v1649, 1.442695
    %v1652 = vpow.pop %v1651
    %v1653 = vmul.f32 %v1650, 1.442695
    %v1654 = vpow.pop %v1653
    %v1655 = vadd.f32 %v1652, 1.0
    %v1656 = vadd.f32 %v1654, 1.0
    %v1657 = vrcp.pop %v1655
    %v1658 = vmul.f32 1.0, %v1657
    %v1659 = vrcp.pop %v1656
    %v1660 = vmul.f32 1.0, %v1659
    %1663 = vrot.lane.b32.xlu0 %v1639, 64
    %v1664 = vpop.permute.xlu0 %1663
    %1665 = vrot.lane.b32.xlu0 %v1644, 64
    %v1666 = vpop.permute.xlu0 %1665
    %v1669 = vmul.f32 %v1658, %v1664
    %v1670 = vmul.f32 %v1660, %v1666
    %1673 = vrot.lane.b32.xlu0 %v1669, 64
    %v1674 = vpop.permute.xlu0 %1673
    %1675 = vrot.lane.b32.xlu0 %v1670, 64
    %v1676 = vpop.permute.xlu0 %1675
    %v1679 = vadd.f32 %v1549, %v1674
    %v1680 = vadd.f32 %v1554, %v1676
    %v1681 = vtanh.pop %v1679
    %v1682 = vtanh.pop %v1680
    %v1683 = vsub.f32 1.0, %v1658
    %v1684 = vsub.f32 1.0, %v1660
    %1687 = vrot.lane.b32.xlu0 %v1681, 96
    %v1688 = vpop.permute.xlu0 %1687
    %1689 = vrot.lane.b32.xlu0 %v1682, 96
    %v1690 = vpop.permute.xlu0 %1689
    %v1693 = vmul.f32 %v1683, %v1688
    %v1694 = vmul.f32 %v1684, %v1690
    %v1695 = vmul.f32 %v1658, %v1127
    %v1696 = vmul.f32 %v1660, %v1128
    %v1697 = vadd.f32 %v1693, %v1695
    %v1698 = vadd.f32 %v1694, %v1696
    %1701 = vrot.lane.b32.xlu0 %v1697, 96
    %v1702 = vpop.permute.xlu0 %1701
    %1703 = vrot.lane.b32.xlu0 %v1698, 96
    %v1704 = vpop.permute.xlu0 %1703
    %v1707 = vsel %vm58, %v1702, 0.0
    %1708 = vadd.xlane.f32.xlu0 %v1707
    %v1709 = vpop.xlane.xlu0 %1708
    %v1710 = vsel %vm58, %v1704, 0.0
    %1711 = vadd.xlane.f32.xlu0 %v1710
    %v1712 = vpop.xlane.xlu0 %1711
    %v1713 = vmul.f32 %v1709, %v107
    %v1714 = vmul.f32 %v1712, %v107
    %v1715 = vsub.f32 %v1697, %v1713
    %v1716 = vsub.f32 %v1698, %v1714
    %v1717 = vmul.f32 %v1715, %v1715
    %v1718 = vmul.f32 %v1716, %v1716
    %1721 = vrot.lane.b32.xlu0 %v1717, 96
    %v1722 = vpop.permute.xlu0 %1721
    %1723 = vrot.lane.b32.xlu0 %v1718, 96
    %v1724 = vpop.permute.xlu0 %1723
    %v1727 = vsel %vm58, %v1722, 0.0
    %1728 = vadd.xlane.f32.xlu0 %v1727
    %v1729 = vpop.xlane.xlu0 %1728
    %v1730 = vsel %vm58, %v1724, 0.0
    %1731 = vadd.xlane.f32.xlu0 %v1730
    %v1732 = vpop.xlane.xlu0 %1731
    %v1733 = vmul.f32 %v1729, %v107
    %v1734 = vmul.f32 %v1732, %v107
    %v1735 = vadd.f32 %v1733, 1e-05
    %v1736 = vadd.f32 %v1734, 1e-05
    %v1737 = vrsqrt.pop %v1735
    %v1738 = vrsqrt.pop %v1736
    %v1739 = vmul.f32 %v1715, %v1737
    %v1740 = vmul.f32 %v1716, %v1738
    %v1741 = vld [vmem:[%s5] sm:$0xff]
    %v1742 = vld [vmem:[%s5 + $0x8] sm:$0xff]
    %v1743 = vld [vmem:[%s5 + $0x10] sm:$0xff]
    %v1744 = vld [vmem:[%s5 + $0x18] sm:$0xff]
    %v1745 = vld [vmem:[%s6] sm:$0x1]
    %v1747 = vlaneseq
    %v1748 = vshrl.u32 %v1747, 7
    %v1749 = vsub.s32 0, %v1748
    %v1750 = vrot.slane %v1745, %v1749
    %1754 = vrot.lane.b32.xlu0 %v1739, 96
    %v1755 = vpop.permute.xlu0 %1754
    %1756 = vrot.lane.b32.xlu0 %v1740, 96
    %v1757 = vpop.permute.xlu0 %1756
    %v1758 = vsel %vm58, %v1755, 0
    %v1760 = vsel %vm58, %v1757, 0
    %1762 = vmatprep.subr.mxu0 0.0
    %1763 = vmatpush1.msra.mxu0 %v1741
    %1764 = vmatprep.subr.mxu0 0.0
    %1765 = vmatpush1.msra.mxu0 %v1742
    %1766 = vmatprep.subr.mxu0 0.0
    %1767 = vmatpush1.msra.mxu0 %v1743
    %1768 = vmatprep.subr.mxu0 0.0
    %1769 = vmatpush1.msra.mxu0 %v1744
    %1770 = vmatprep.subr.mxu0 0.0
    %1771 = vmatpush1.msra.mxu0 0.0
    %1772 = vmatprep.subr.mxu0 0.0
    %1773 = vmatpush1.msra.mxu0 0.0
    %1774 = vmatprep.subr.mxu0 0.0
    %1775 = vmatpush1.msra.mxu0 0.0
    %1776 = vmatprep.subr.mxu0 0.0
    %1777 = vmatpush1.msra.mxu0 0.0
    %1778 = vmatprep.subr.mxu0 0.0
    %1779 = vmatpush1.msra.mxu0 0.0
    %1780 = vmatprep.subr.mxu0 0.0
    %1781 = vmatpush1.msra.mxu0 0.0
    %1782 = vmatprep.subr.mxu0 0.0
    %1783 = vmatpush1.msra.mxu0 0.0
    %1784 = vmatprep.subr.mxu0 0.0
    %1785 = vmatpush1.msra.mxu0 0.0
    %1786 = vmatprep.subr.mxu0 0.0
    %1787 = vmatpush1.msra.mxu0 0.0
    %1788 = vmatprep.subr.mxu0 0.0
    %1789 = vmatpush1.msra.mxu0 0.0
    %1790 = vmatprep.subr.mxu0 0.0
    %1791 = vmatpush1.msra.mxu0 0.0
    %1792 = vmatprep.subr.mxu0 0.0
    %1793 = vmatpush1.msra.mxu0 0.0
    %1794 = vmatprep.subr.mxu0 0.0
    %1795 = vmatpush1.msra.mxu0 0.0
    %1796 = vmatprep.subr.mxu0 0.0
    %1797 = vmatpush1.msra.mxu0 0.0
    %1798 = vmatprep.subr.mxu0 0.0
    %1799 = vmatpush1.msra.mxu0 0.0
    %1800 = vmatprep.subr.mxu0 0.0
    %1801 = vmatpush1.msra.mxu0 0.0
    %1802 = vmatprep.subr.mxu0 0.0
    %1803 = vmatpush1.msra.mxu0 0.0
    %1804 = vmatprep.subr.mxu0 0.0
    %1805 = vmatpush1.msra.mxu0 0.0
    %1806 = vmatprep.subr.mxu0 0.0
    %1807 = vmatpush1.msra.mxu0 0.0
    %1808 = vmatprep.subr.mxu0 0.0
    %1809 = vmatpush1.msra.mxu0 0.0
    %1810 = vmatprep.subr.mxu0 0.0
    %1811 = vmatpush1.msra.mxu0 0.0
    %1812 = vmatprep.subr.mxu0 0.0
    %1813 = vmatpush1.msra.mxu0 0.0
    %1814 = vmatprep.subr.mxu0 0.0
    %1815 = vmatpush1.msra.mxu0 0.0
    %1816 = vmatprep.subr.mxu0 0.0
    %1817 = vmatpush1.msra.mxu0 0.0
    %1818 = vmatprep.subr.mxu0 0.0
    %1819 = vmatpush1.msra.mxu0 0.0
    %1820 = vmatprep.subr.mxu0 0.0
    %1821 = vmatpush1.msra.mxu0 0.0
    %1822 = vmatprep.subr.mxu0 0.0
    %1823 = vmatpush1.msra.mxu0 0.0
    %1824 = vmatprep.subr.mxu0 0.0
    %1825 = vmatpush1.msra.mxu0 0.0
    %1826 = vmatprep.mubr.f32.mxu0 0.0
    %1827 = vmatmul.mubr.f32.gmra.mrb[0].mxu0 %v1758
    %v1828 = vpop.f32.mrb[0].mxu0
    %v1829 = vadd.f32 %v1750, %v1828
    %v1830 = vpop.f32.mrb[0].mxu0
    %1831 = vmatprep.mubr.f32.mxu0 0.0
    %1832 = vmatmul.mubr.f32.gmra.mrb[0].mxu0 %v1760
    %v1833 = vpop.f32.mrb[0].mxu0
    %v1834 = vadd.f32 %v1750, %v1833
    %v1835 = vpop.f32.mrb[0].mxu0
    %1836 = vdwg.mxu0
    %v1838 = vsel %vm58, %v1829, 0
    %v1841 = vsel %vm58, %v1834, 0
    %1843 = vmatprep.subr.mxu0 0.0
    %1844 = vmatpush1.xpose.msra.mxu0 %v601
    %1845 = vmatprep.subr.mxu0 0.0
    %1846 = vmatpush1.xpose.msra.mxu0 %v604
    %1847 = vmatprep.subr.mxu0 0.0
    %1848 = vmatpush1.xpose.msra.mxu0 %v607
    %1849 = vmatprep.subr.mxu0 0.0
    %1850 = vmatpush1.xpose.msra.mxu0 %v610
    %1851 = vmatprep.subr.mxu0 0.0
    %1852 = vmatpush1.xpose.msra.mxu0 %v613
    %1853 = vmatprep.subr.mxu0 0.0
    %1854 = vmatpush1.xpose.msra.mxu0 %v616
    %1855 = vmatprep.subr.mxu0 0.0
    %1856 = vmatpush1.xpose.msra.mxu0 %v619
    %1857 = vmatprep.subr.mxu0 0.0
    %1858 = vmatpush1.xpose.msra.mxu0 %v622
    %1859 = vmatprep.subr.mxu0 0.0
    %1860 = vmatpush1.xpose.msra.mxu0 %v625
    %1861 = vmatprep.subr.mxu0 0.0
    %1862 = vmatpush1.xpose.msra.mxu0 %v628
    %1863 = vmatprep.subr.mxu0 0.0
    %1864 = vmatpush1.xpose.msra.mxu0 %v631
    %1865 = vmatprep.subr.mxu0 0.0
    %1866 = vmatpush1.xpose.msra.mxu0 %v634
    %1867 = vmatprep.subr.mxu0 0.0
    %1868 = vmatpush1.xpose.msra.mxu0 %v637
    %1869 = vmatprep.subr.mxu0 0.0
    %1870 = vmatpush1.xpose.msra.mxu0 %v640
    %1871 = vmatprep.subr.mxu0 0.0
    %1872 = vmatpush1.xpose.msra.mxu0 %v643
    %1873 = vmatprep.subr.mxu0 0.0
    %1874 = vmatpush1.xpose.msra.mxu0 %v646
    %1875 = vmatprep.subr.mxu0 0.0
    %1876 = vmatpush1.xpose.msra.mxu0 0.0
    %1877 = vmatprep.subr.mxu0 0.0
    %1878 = vmatpush1.xpose.msra.mxu0 0.0
    %1879 = vmatprep.subr.mxu0 0.0
    %1880 = vmatpush1.xpose.msra.mxu0 0.0
    %1881 = vmatprep.subr.mxu0 0.0
    %1882 = vmatpush1.xpose.msra.mxu0 0.0
    %1883 = vmatprep.subr.mxu0 0.0
    %1884 = vmatpush1.xpose.msra.mxu0 0.0
    %1885 = vmatprep.subr.mxu0 0.0
    %1886 = vmatpush1.xpose.msra.mxu0 0.0
    %1887 = vmatprep.subr.mxu0 0.0
    %1888 = vmatpush1.xpose.msra.mxu0 0.0
    %1889 = vmatprep.subr.mxu0 0.0
    %1890 = vmatpush1.xpose.msra.mxu0 0.0
    %1891 = vmatprep.subr.mxu0 0.0
    %1892 = vmatpush1.xpose.msra.mxu0 0.0
    %1893 = vmatprep.subr.mxu0 0.0
    %1894 = vmatpush1.xpose.msra.mxu0 0.0
    %1895 = vmatprep.subr.mxu0 0.0
    %1896 = vmatpush1.xpose.msra.mxu0 0.0
    %1897 = vmatprep.subr.mxu0 0.0
    %1898 = vmatpush1.xpose.msra.mxu0 0.0
    %1899 = vmatprep.subr.mxu0 0.0
    %1900 = vmatpush1.xpose.msra.mxu0 0.0
    %1901 = vmatprep.subr.mxu0 0.0
    %1902 = vmatpush1.xpose.msra.mxu0 0.0
    %1903 = vmatprep.subr.mxu0 0.0
    %1904 = vmatpush1.xpose.msra.mxu0 0.0
    %1905 = vmatprep.subr.mxu0 0.0
    %1906 = vmatpush1.xpose.msra.mxu0 0.0
    %1907 = vmatprep.mubr.f32.mxu0 0.0
    %1908 = vmatmul.mubr.f32.gmra.mrb[0].mxu0 %v1838
    %v1909 = vpop.f32.mrb[0].mxu0
    %v1910 = vadd.f32 %v472, %v1909
    %v1911 = vpop.f32.mrb[0].mxu0
    %1912 = vmatprep.mubr.f32.mxu0 0.0
    %1913 = vmatmul.mubr.f32.gmra.mrb[0].mxu0 %v1841
    %v1914 = vpop.f32.mrb[0].mxu0
    %v1915 = vadd.f32 %v473, %v1914
    %v1916 = vpop.f32.mrb[0].mxu0
    %1917 = vdwg.mxu0
    %v1918 = vmax.f32 %v1910, %v1915
    %v1919 = vrot.slane %v1918, 4
    %v1920 = vmax.f32 %v1918, %v1919
    %v1921 = vrot.slane %v1920, 2
    %v1922 = vmax.f32 %v1920, %v1921
    %v1923 = vrot.slane %v1922, 1
    %v1924 = vmax.f32 %v1922, %v1923
    %v1925 = vsub.f32 %v1910, %v1924
    %v1926 = vsub.f32 %v1915, %v1924
    %v1927 = vmul.f32 %v1925, 1.442695
    %v1928 = vpow.pop %v1927
    %v1929 = vmul.f32 %v1926, 1.442695
    %v1930 = vpow.pop %v1929
    %v1931 = vadd.f32 %v1928, %v1930
    %v1932 = vrot.slane %v1931, 4
    %v1933 = vadd.f32 %v1931, %v1932
    %v1934 = vrot.slane %v1933, 2
    %v1935 = vadd.f32 %v1933, %v1934
    %v1936 = vrot.slane %v1935, 1
    %v1937 = vadd.f32 %v1935, %v1936
    %v1938 = vrcp.pop %v1937
    %v1939 = vmul.f32 %v1928, %v1938
    %v1940 = vmul.f32 %v1930, %v1938
    %s1941 = scalar_lea.vmem [#allocation4], 32
    %1942 = vst [vmem:[%s1941] sm:$0xff] %v1939
    %1943 = vst [vmem:[%s1941 + $0x8] sm:$0xff] %v1940
    %1944 = vadd.xlane.f32.xlu0 %v1939
    %v1945 = vpop.xlane.xlu0 %1944
    %1946 = vadd.xlane.f32.xlu0 %v1940
    %v1947 = vpop.xlane.xlu0 %1946
    %v1948 = vadd.f32 %v1945, 1e-08
    %v1949 = vadd.f32 %v1947, 1e-08
    %v1950 = vrcp.pop %v1948
    %v1951 = vrcp.pop %v1949
    %v1952 = vmul.f32 %v1948, %v1950
    %v1953 = vmul.f32 %v1949, %v1951
    %v1954 = vsub.f32 2.0, %v1952
    %v1955 = vsub.f32 2.0, %v1953
    %v1956 = vmul.f32 %v1950, %v1954
    %v1957 = vmul.f32 %v1951, %v1955
    %v1958 = vmul.f32 %v1939, %v1956
    %v1959 = vmul.f32 %v1940, %v1957
    %1960 = vmatprep.subr.mxu0 0.0
    %1961 = vmatpush1.msra.mxu0 %v765
    %1962 = vmatprep.subr.mxu0 0.0
    %1963 = vmatpush1.msra.mxu0 %v767
    %1964 = vmatprep.subr.mxu0 0.0
    %1965 = vmatpush1.msra.mxu0 %v769
    %1966 = vmatprep.subr.mxu0 0.0
    %1967 = vmatpush1.msra.mxu0 %v771
    %1968 = vmatprep.subr.mxu0 0.0
    %1969 = vmatpush1.msra.mxu0 %v773
    %1970 = vmatprep.subr.mxu0 0.0
    %1971 = vmatpush1.msra.mxu0 %v775
    %1972 = vmatprep.subr.mxu0 0.0
    %1973 = vmatpush1.msra.mxu0 %v777
    %1974 = vmatprep.subr.mxu0 0.0
    %1975 = vmatpush1.msra.mxu0 %v779
    %1976 = vmatprep.subr.mxu0 0.0
    %1977 = vmatpush1.msra.mxu0 %v781
    %1978 = vmatprep.subr.mxu0 0.0
    %1979 = vmatpush1.msra.mxu0 %v783
    %1980 = vmatprep.subr.mxu0 0.0
    %1981 = vmatpush1.msra.mxu0 %v785
    %1982 = vmatprep.subr.mxu0 0.0
    %1983 = vmatpush1.msra.mxu0 %v787
    %1984 = vmatprep.subr.mxu0 0.0
    %1985 = vmatpush1.msra.mxu0 %v789
    %1986 = vmatprep.subr.mxu0 0.0
    %1987 = vmatpush1.msra.mxu0 %v791
    %1988 = vmatprep.subr.mxu0 0.0
    %1989 = vmatpush1.msra.mxu0 %v793
    %1990 = vmatprep.subr.mxu0 0.0
    %1991 = vmatpush1.msra.mxu0 %v795
    %1992 = vmatprep.subr.mxu0 0.0
    %1993 = vmatpush1.msra.mxu0 0.0
    %1994 = vmatprep.subr.mxu0 0.0
    %1995 = vmatpush1.msra.mxu0 0.0
    %1996 = vmatprep.subr.mxu0 0.0
    %1997 = vmatpush1.msra.mxu0 0.0
    %1998 = vmatprep.subr.mxu0 0.0
    %1999 = vmatpush1.msra.mxu0 0.0
    %2000 = vmatprep.subr.mxu0 0.0
    %2001 = vmatpush1.msra.mxu0 0.0
    %2002 = vmatprep.subr.mxu0 0.0
    %2003 = vmatpush1.msra.mxu0 0.0
    %2004 = vmatprep.subr.mxu0 0.0
    %2005 = vmatpush1.msra.mxu0 0.0
    %2006 = vmatprep.subr.mxu0 0.0
    %2007 = vmatpush1.msra.mxu0 0.0
    %2008 = vmatprep.subr.mxu0 0.0
    %2009 = vmatpush1.msra.mxu0 0.0
    %2010 = vmatprep.subr.mxu0 0.0
    %2011 = vmatpush1.msra.mxu0 0.0
    %2012 = vmatprep.subr.mxu0 0.0
    %2013 = vmatpush1.msra.mxu0 0.0
    %2014 = vmatprep.subr.mxu0 0.0
    %2015 = vmatpush1.msra.mxu0 0.0
    %2016 = vmatprep.subr.mxu0 0.0
    %2017 = vmatpush1.msra.mxu0 0.0
    %2018 = vmatprep.subr.mxu0 0.0
    %2019 = vmatpush1.msra.mxu0 0.0
    %2020 = vmatprep.subr.mxu0 0.0
    %2021 = vmatpush1.msra.mxu0 0.0
    %2022 = vmatprep.subr.mxu0 0.0
    %2023 = vmatpush1.msra.mxu0 0.0
    %2024 = vmatprep.mubr.f32.mxu0 0.0
    %2025 = vmatmul.mubr.f32.gmra.mrb[0].mxu0 %v1958
    %v2026 = vpop.f32.mrb[0].mxu0
    %v2027 = vadd.f32 0.0, %v2026
    %v2028 = vpop.f32.mrb[0].mxu0
    %2029 = vmatprep.mubr.f32.mxu0 0.0
    %2030 = vmatmul.mubr.f32.gmra.mrb[0].mxu0 %v1959
    %v2031 = vpop.f32.mrb[0].mxu0
    %v2032 = vadd.f32 0.0, %v2031
    %v2033 = vpop.f32.mrb[0].mxu0
    %2034 = vdwg.mxu0
    %v2035 = vld [vmem:[%s7] sm:$0xff]
    %v2036 = vld [vmem:[%s7 + $0x8] sm:$0xff]
    %v2037 = vld [vmem:[%s7 + $0x10] sm:$0xff]
    %v2038 = vld [vmem:[%s7 + $0x18] sm:$0xff]
    %v2039 = vld [vmem:[%s9] sm:$0x1]
    %v2041 = vlaneseq
    %v2042 = vshrl.u32 %v2041, 7
    %v2043 = vsub.s32 0, %v2042
    %v2044 = vrot.slane %v2039, %v2043
    %v2047 = vsel %vm58, %v2027, 0
    %v2050 = vsel %vm58, %v2032, 0
    %2052 = vmatprep.subr.mxu0 0.0
    %2053 = vmatpush1.msra.mxu0 %v2035
    %2054 = vmatprep.subr.mxu0 0.0
    %2055 = vmatpush1.msra.mxu0 %v2036
    %2056 = vmatprep.subr.mxu0 0.0
    %2057 = vmatpush1.msra.mxu0 %v2037
    %2058 = vmatprep.subr.mxu0 0.0
    %2059 = vmatpush1.msra.mxu0 %v2038
    %2060 = vmatprep.subr.mxu0 0.0
    %2061 = vmatpush1.msra.mxu0 0.0
    %2062 = vmatprep.subr.mxu0 0.0
    %2063 = vmatpush1.msra.mxu0 0.0
    %2064 = vmatprep.subr.mxu0 0.0
    %2065 = vmatpush1.msra.mxu0 0.0
    %2066 = vmatprep.subr.mxu0 0.0
    %2067 = vmatpush1.msra.mxu0 0.0
    %2068 = vmatprep.subr.mxu0 0.0
    %2069 = vmatpush1.msra.mxu0 0.0
    %2070 = vmatprep.subr.mxu0 0.0
    %2071 = vmatpush1.msra.mxu0 0.0
    %2072 = vmatprep.subr.mxu0 0.0
    %2073 = vmatpush1.msra.mxu0 0.0
    %2074 = vmatprep.subr.mxu0 0.0
    %2075 = vmatpush1.msra.mxu0 0.0
    %2076 = vmatprep.subr.mxu0 0.0
    %2077 = vmatpush1.msra.mxu0 0.0
    %2078 = vmatprep.subr.mxu0 0.0
    %2079 = vmatpush1.msra.mxu0 0.0
    %2080 = vmatprep.subr.mxu0 0.0
    %2081 = vmatpush1.msra.mxu0 0.0
    %2082 = vmatprep.subr.mxu0 0.0
    %2083 = vmatpush1.msra.mxu0 0.0
    %2084 = vmatprep.subr.mxu0 0.0
    %2085 = vmatpush1.msra.mxu0 0.0
    %2086 = vmatprep.subr.mxu0 0.0
    %2087 = vmatpush1.msra.mxu0 0.0
    %2088 = vmatprep.subr.mxu0 0.0
    %2089 = vmatpush1.msra.mxu0 0.0
    %2090 = vmatprep.subr.mxu0 0.0
    %2091 = vmatpush1.msra.mxu0 0.0
    %2092 = vmatprep.subr.mxu0 0.0
    %2093 = vmatpush1.msra.mxu0 0.0
    %2094 = vmatprep.subr.mxu0 0.0
    %2095 = vmatpush1.msra.mxu0 0.0
    %2096 = vmatprep.subr.mxu0 0.0
    %2097 = vmatpush1.msra.mxu0 0.0
    %2098 = vmatprep.subr.mxu0 0.0
    %2099 = vmatpush1.msra.mxu0 0.0
    %2100 = vmatprep.subr.mxu0 0.0
    %2101 = vmatpush1.msra.mxu0 0.0
    %2102 = vmatprep.subr.mxu0 0.0
    %2103 = vmatpush1.msra.mxu0 0.0
    %2104 = vmatprep.subr.mxu0 0.0
    %2105 = vmatpush1.msra.mxu0 0.0
    %2106 = vmatprep.subr.mxu0 0.0
    %2107 = vmatpush1.msra.mxu0 0.0
    %2108 = vmatprep.subr.mxu0 0.0
    %2109 = vmatpush1.msra.mxu0 0.0
    %2110 = vmatprep.subr.mxu0 0.0
    %2111 = vmatpush1.msra.mxu0 0.0
    %2112 = vmatprep.subr.mxu0 0.0
    %2113 = vmatpush1.msra.mxu0 0.0
    %2114 = vmatprep.subr.mxu0 0.0
    %2115 = vmatpush1.msra.mxu0 0.0
    %2116 = vmatprep.mubr.f32.mxu0 0.0
    %2117 = vmatmul.mubr.f32.gmra.mrb[0].mxu0 %v2047
    %v2118 = vpop.f32.mrb[0].mxu0
    %v2119 = vadd.f32 %v2044, %v2118
    %v2120 = vpop.f32.mrb[0].mxu0
    %2121 = vmatprep.mubr.f32.mxu0 0.0
    %2122 = vmatmul.mubr.f32.gmra.mrb[0].mxu0 %v2050
    %v2123 = vpop.f32.mrb[0].mxu0
    %v2124 = vadd.f32 %v2044, %v2123
    %v2125 = vpop.f32.mrb[0].mxu0
    %2126 = vdwg.mxu0
    %v2127 = vld [vmem:[%s8] sm:$0xff]
    %v2128 = vld [vmem:[%s8 + $0x8] sm:$0xff]
    %v2129 = vld [vmem:[%s8 + $0x10] sm:$0xff]
    %v2130 = vld [vmem:[%s8 + $0x18] sm:$0xff]
    %v2131 = vld [vmem:[%s10] sm:$0x1]
    %v2133 = vlaneseq
    %v2134 = vshrl.u32 %v2133, 7
    %v2135 = vsub.s32 0, %v2134
    %v2136 = vrot.slane %v2131, %v2135
    %v2138 = vsel %vm58, %v1702, 0
    %v2140 = vsel %vm58, %v1704, 0
    %2142 = vmatprep.subr.mxu0 0.0
    %2143 = vmatpush1.msra.mxu0 %v2127
    %2144 = vmatprep.subr.mxu0 0.0
    %2145 = vmatpush1.msra.mxu0 %v2128
    %2146 = vmatprep.subr.mxu0 0.0
    %2147 = vmatpush1.msra.mxu0 %v2129
    %2148 = vmatprep.subr.mxu0 0.0
    %2149 = vmatpush1.msra.mxu0 %v2130
    %2150 = vmatprep.subr.mxu0 0.0
    %2151 = vmatpush1.msra.mxu0 0.0
    %2152 = vmatprep.subr.mxu0 0.0
    %2153 = vmatpush1.msra.mxu0 0.0
    %2154 = vmatprep.subr.mxu0 0.0
    %2155 = vmatpush1.msra.mxu0 0.0
    %2156 = vmatprep.subr.mxu0 0.0
    %2157 = vmatpush1.msra.mxu0 0.0
    %2158 = vmatprep.subr.mxu0 0.0
    %2159 = vmatpush1.msra.mxu0 0.0
    %2160 = vmatprep.subr.mxu0 0.0
    %2161 = vmatpush1.msra.mxu0 0.0
    %2162 = vmatprep.subr.mxu0 0.0
    %2163 = vmatpush1.msra.mxu0 0.0
    %2164 = vmatprep.subr.mxu0 0.0
    %2165 = vmatpush1.msra.mxu0 0.0
    %2166 = vmatprep.subr.mxu0 0.0
    %2167 = vmatpush1.msra.mxu0 0.0
    %2168 = vmatprep.subr.mxu0 0.0
    %2169 = vmatpush1.msra.mxu0 0.0
    %2170 = vmatprep.subr.mxu0 0.0
    %2171 = vmatpush1.msra.mxu0 0.0
    %2172 = vmatprep.subr.mxu0 0.0
    %2173 = vmatpush1.msra.mxu0 0.0
    %2174 = vmatprep.subr.mxu0 0.0
    %2175 = vmatpush1.msra.mxu0 0.0
    %2176 = vmatprep.subr.mxu0 0.0
    %2177 = vmatpush1.msra.mxu0 0.0
    %2178 = vmatprep.subr.mxu0 0.0
    %2179 = vmatpush1.msra.mxu0 0.0
    %2180 = vmatprep.subr.mxu0 0.0
    %2181 = vmatpush1.msra.mxu0 0.0
    %2182 = vmatprep.subr.mxu0 0.0
    %2183 = vmatpush1.msra.mxu0 0.0
    %2184 = vmatprep.subr.mxu0 0.0
    %2185 = vmatpush1.msra.mxu0 0.0
    %2186 = vmatprep.subr.mxu0 0.0
    %2187 = vmatpush1.msra.mxu0 0.0
    %2188 = vmatprep.subr.mxu0 0.0
    %2189 = vmatpush1.msra.mxu0 0.0
    %2190 = vmatprep.subr.mxu0 0.0
    %2191 = vmatpush1.msra.mxu0 0.0
    %2192 = vmatprep.subr.mxu0 0.0
    %2193 = vmatpush1.msra.mxu0 0.0
    %2194 = vmatprep.subr.mxu0 0.0
    %2195 = vmatpush1.msra.mxu0 0.0
    %2196 = vmatprep.subr.mxu0 0.0
    %2197 = vmatpush1.msra.mxu0 0.0
    %2198 = vmatprep.subr.mxu0 0.0
    %2199 = vmatpush1.msra.mxu0 0.0
    %2200 = vmatprep.subr.mxu0 0.0
    %2201 = vmatpush1.msra.mxu0 0.0
    %2202 = vmatprep.subr.mxu0 0.0
    %2203 = vmatpush1.msra.mxu0 0.0
    %2204 = vmatprep.subr.mxu0 0.0
    %2205 = vmatpush1.msra.mxu0 0.0
    %2206 = vmatprep.mubr.f32.mxu0 0.0
    %2207 = vmatmul.mubr.f32.gmra.mrb[0].mxu0 %v2138
    %v2208 = vpop.f32.mrb[0].mxu0
    %v2209 = vadd.f32 %v2136, %v2208
    %v2210 = vpop.f32.mrb[0].mxu0
    %2211 = vmatprep.mubr.f32.mxu0 0.0
    %2212 = vmatmul.mubr.f32.gmra.mrb[0].mxu0 %v2140
    %v2213 = vpop.f32.mrb[0].mxu0
    %v2214 = vadd.f32 %v2136, %v2213
    %v2215 = vpop.f32.mrb[0].mxu0
    %2216 = vdwg.mxu0
    %v2217 = vadd.f32 %v2119, %v2209
    %v2218 = vadd.f32 %v2124, %v2214
    %v2219 = vxor.u32 %v2217, 2147483648
    %v2220 = vxor.u32 %v2218, 2147483648
    %v2221 = vmul.f32 %v2219, 1.442695
    %v2222 = vpow.pop %v2221
    %v2223 = vmul.f32 %v2220, 1.442695
    %v2224 = vpow.pop %v2223
    %v2225 = vadd.f32 %v2222, 1.0
    %v2226 = vadd.f32 %v2224, 1.0
    %v2227 = vrcp.pop %v2225
    %v2228 = vmul.f32 1.0, %v2227
    %v2229 = vrcp.pop %v2226
    %v2230 = vmul.f32 1.0, %v2229
    %2233 = vrot.lane.b32.xlu0 %v2209, 64
    %v2234 = vpop.permute.xlu0 %2233
    %2235 = vrot.lane.b32.xlu0 %v2214, 64
    %v2236 = vpop.permute.xlu0 %2235
    %v2239 = vmul.f32 %v2228, %v2234
    %v2240 = vmul.f32 %v2230, %v2236
    %2243 = vrot.lane.b32.xlu0 %v2239, 64
    %v2244 = vpop.permute.xlu0 %2243
    %2245 = vrot.lane.b32.xlu0 %v2240, 64
    %v2246 = vpop.permute.xlu0 %2245
    %v2249 = vadd.f32 %v2119, %v2244
    %v2250 = vadd.f32 %v2124, %v2246
    %v2251 = vtanh.pop %v2249
    %v2252 = vtanh.pop %v2250
    %v2253 = vsub.f32 1.0, %v2228
    %v2254 = vsub.f32 1.0, %v2230
    %2257 = vrot.lane.b32.xlu0 %v2251, 96
    %v2258 = vpop.permute.xlu0 %2257
    %2259 = vrot.lane.b32.xlu0 %v2252, 96
    %v2260 = vpop.permute.xlu0 %2259
    %v2263 = vmul.f32 %v2253, %v2258
    %v2264 = vmul.f32 %v2254, %v2260
    %v2265 = vmul.f32 %v2228, %v1697
    %v2266 = vmul.f32 %v2230, %v1698
    %v2267 = vadd.f32 %v2263, %v2265
    %v2268 = vadd.f32 %v2264, %v2266
    %2271 = vrot.lane.b32.xlu0 %v2267, 96
    %v2272 = vpop.permute.xlu0 %2271
    %2273 = vrot.lane.b32.xlu0 %v2268, 96
    %v2274 = vpop.permute.xlu0 %2273
    %2277 = vst.msk [vmem:[#allocation2] sm:$0xff] %vm58, %v2272
    %2278 = vst.msk [vmem:[#allocation2 + $0x8] sm:$0xff] %vm58, %v2274
    // Predicated region
    $region46: #{tpu_custom_call.1} parent=1 // pred_check
      _
    $region47: #{tpu_custom_call.1} parent=1 // pred_check_branch
      %2280 = sbr.rel (0) target = $region49
    $region48: #{tpu_custom_call.1} parent=1 // pred_region
      %s2282 = ssub.s32 256, 256
      %2283 = vsyncadd [#allocation3], %s2282
      %s2284 = sshll.u32 [#allocation2], 4
      %s2285 = int_to_ptr.vmem [resolvable:$true] %s2284
      %2290 = dma.vmem_to_hbm [thread:$0]  %s2285, 256, %s11, [#allocation3], 128, 128, 8
    $region49: #{tpu_custom_call.1} parent=1 // pred_fallthru
      _
    // Predicated region
    $region50: #{tpu_custom_call.1} parent=1 // pred_check
      _
    $region51: #{tpu_custom_call.1} parent=1 // pred_check_branch
      %2292 = sbr.rel (0) target = $region53
    $region52: #{tpu_custom_call.1} parent=1 // pred_region
      %s2294 = ssub.s32 768, 768
      %2295 = vsyncadd [#allocation5], %s2294
      %s2296 = sshll.u32 [#allocation4], 4
      %s2297 = int_to_ptr.vmem [resolvable:$true] %s2296
      %2302 = dma.vmem_to_hbm [thread:$0]  %s2297, 768, %s12, [#allocation5], 128, 128, 8
    $region53: #{tpu_custom_call.1} parent=1 // pred_fallthru
      _
    // Predicated region
    $region54: #{tpu_custom_call.1} parent=1 // pred_check
      _
    $region55: #{tpu_custom_call.1} parent=1 // pred_check_branch
      %2304 = sbr.rel (0) target = $region57
    $region56: #{tpu_custom_call.1} parent=1 // pred_region
      %2305 = dma.done [#allocation3], 256
    $region57: #{tpu_custom_call.1} parent=1 // pred_fallthru
      _
    // Predicated region
    $region58: #{tpu_custom_call.1} parent=1 // pred_check
      _
    $region59: #{tpu_custom_call.1} parent=1 // pred_check_branch
      %2307 = sbr.rel (0) target = $region61
    $region60: #{tpu_custom_call.1} parent=1 // pred_region
      %2308 = dma.done [#allocation5], 768
    $region61: #{tpu_custom_call.1} parent=1 // pred_fallthru
      _
    %2309 = vsyncpa [#allocation3], 1
    %2310 = vsyncpa [#allocation5], 1

</llo_original>
